<compile_context>
chip_gen: v5e
topology: v5e:2x2
jax: 0.10.0
libtpu: 0.0.40
codegen_flags: <defaults>
</compile_context>

<pallas_src>
import functools
import itertools
import math

import jax
import jax.numpy as jnp
from jax.experimental import pallas as pl
from jax.experimental.pallas import tpu as pltpu

BN_EPS = 1e-5
_MAX_ROW_TILE = 512   # rows per grid step; tiny at these widths, fits any scoped-VMEM limit
_ROW_ALIGN = 128      # pad N to a multiple of this so row tiles stay (8,128)-friendly


# ----------------------------------------------------------------------------
# Small helpers
# ----------------------------------------------------------------------------
def _round_up(x, m):
    return (x + m - 1) // m * m


def _pick_row_tile(n, max_tile=_MAX_ROW_TILE):
    t = min(max_tile, n)
    while n % t:
        t //= 2
    return t


def fold_bn_into_weight(w, gamma, beta, mean, var):
    """Fold inference-mode BN into a bias-free conv: y = x @ (W*s) + (beta - mean*s)."""
    s = gamma / jnp.sqrt(var + BN_EPS)
    w16 = (w.astype(jnp.float32) * s[None, :]).astype(jnp.bfloat16)
    b = (beta - mean * s).reshape(1, -1).astype(jnp.float32)
    return w16, b


def _parallel_params():
    return pltpu.CompilerParams(dimension_semantics=("parallel",))


# ----------------------------------------------------------------------------
# Pallas kernels (bf16 MXU, f32 accumulate + epilogue)
# ----------------------------------------------------------------------------
def _conv1_split_kernel(nsplit, *refs):
    """relu(x @ W_j + b_j) for each of the `nsplit` channel groups -> separate outputs."""
    x_ref = refs[0]
    w_refs = refs[1:1 + nsplit]
    b_refs = refs[1 + nsplit:1 + 2 * nsplit]
    out_refs = refs[1 + 2 * nsplit:]
    x = x_ref[...]
    for w_ref, b_ref, o_ref in zip(w_refs, b_refs, out_refs):
        y = jnp.dot(x, w_ref[...], preferred_element_type=jnp.float32)
        o_ref[...] = jnp.maximum(y + b_ref[...], 0.0).astype(o_ref.dtype)


def _group_conv_kernel(g_ref, w_ref, b_ref, nxt_ref, sp_ref, nin_ref):
    """Sparse 3^3 conv (pre-gathered) + BN + ReLU; also emits (result + next split)
    as the next iteration's gather input (fused Res2Net chain add)."""
    y = jnp.dot(g_ref[...], w_ref[...], preferred_element_type=jnp.float32)
    y = jnp.maximum(y + b_ref[...], 0.0)
    sp_ref[...] = y.astype(sp_ref.dtype)
    nin_ref[...] = (y + nxt_ref[...].astype(jnp.float32)).astype(nin_ref.dtype)


def _group_conv_last_kernel(g_ref, w_ref, b_ref, sp_ref):
    y = jnp.dot(g_ref[...], w_ref[...], preferred_element_type=jnp.float32)
    sp_ref[...] = jnp.maximum(y + b_ref[...], 0.0).astype(sp_ref.dtype)


def _conv3_kernel(npieces, *refs):
    """relu(sum_j piece_j @ W3_j + b3 + residual): channel concat folded into per-piece dots."""
    piece_refs = refs[:npieces]
    w_refs = refs[npieces:2 * npieces]
    b_ref = refs[2 * npieces]
    r_ref = refs[2 * npieces + 1]
    o_ref = refs[2 * npieces + 2]
    acc = b_ref[...] + r_ref[...].astype(jnp.float32)
    for p_ref, w_ref in zip(piece_refs, w_refs):
        acc = acc + jnp.dot(p_ref[...], w_ref[...], preferred_element_type=jnp.float32)
    o_ref[...] = jnp.maximum(acc, 0.0).astype(o_ref.dtype)


# ----------------------------------------------------------------------------
# pallas_call wrappers (row-tiled grid, weights/bias resident)
# ----------------------------------------------------------------------------
def conv1_split(x16, w1_16, b1, width, scale, tile, grid):
    n_pad, cin = x16.shape
    w_pieces = [w1_16[:, j * width:(j + 1) * width] for j in range(scale)]
    b_pieces = [b1[:, j * width:(j + 1) * width] for j in range(scale)]
    in_specs = ([pl.BlockSpec((tile, cin), lambda i: (i, 0))]
                + [pl.BlockSpec((cin, width), lambda i: (0, 0)) for _ in range(scale)]
                + [pl.BlockSpec((1, width), lambda i: (0, 0)) for _ in range(scale)])
    out_shape = tuple(jax.ShapeDtypeStruct((n_pad, width), jnp.bfloat16)
                      for _ in range(scale))
    out_specs = tuple(pl.BlockSpec((tile, width), lambda i: (i, 0)) for _ in range(scale))
    return pl.pallas_call(
        functools.partial(_conv1_split_kernel, scale),
        out_shape=out_shape, grid=grid, in_specs=in_specs, out_specs=out_specs,
        compiler_params=_parallel_params(),
    )(x16, *w_pieces, *b_pieces)


def group_conv(gathered16, w16, b, nxt16, tile, grid):
    n_pad, kw = gathered16.shape
    width = w16.shape[1]
    in_specs = [pl.BlockSpec((tile, kw), lambda i: (i, 0)),
                pl.BlockSpec((kw, width), lambda i: (0, 0)),
                pl.BlockSpec((1, width), lambda i: (0, 0))]
    if nxt16 is None:
        return pl.pallas_call(
            _group_conv_last_kernel,
            out_shape=jax.ShapeDtypeStruct((n_pad, width), jnp.bfloat16),
            grid=grid, in_specs=in_specs,
            out_specs=pl.BlockSpec((tile, width), lambda i: (i, 0)),
            compiler_params=_parallel_params(),
        )(gathered16, w16, b)
    in_specs.append(pl.BlockSpec((tile, width), lambda i: (i, 0)))
    return pl.pallas_call(
        _group_conv_kernel,
        out_shape=(jax.ShapeDtypeStruct((n_pad, width), jnp.bfloat16),
                   jax.ShapeDtypeStruct((n_pad, width), jnp.bfloat16)),
        grid=grid, in_specs=in_specs,
        out_specs=(pl.BlockSpec((tile, width), lambda i: (i, 0)),
                   pl.BlockSpec((tile, width), lambda i: (i, 0))),
        compiler_params=_parallel_params(),
    )(gathered16, w16, b, nxt16)


def conv3_fused(pieces16, w_pieces16, b3, residual_f32, tile, grid):
    n_pad = residual_f32.shape[0]
    planes = w_pieces16[0].shape[1]
    width = pieces16[0].shape[1]
    npieces = len(pieces16)
    in_specs = ([pl.BlockSpec((tile, width), lambda i: (i, 0)) for _ in range(npieces)]
                + [pl.BlockSpec((width, planes), lambda i: (0, 0)) for _ in range(npieces)]
                + [pl.BlockSpec((1, planes), lambda i: (0, 0)),
                   pl.BlockSpec((tile, planes), lambda i: (i, 0))])
    return pl.pallas_call(
        functools.partial(_conv3_kernel, npieces),
        out_shape=jax.ShapeDtypeStruct((n_pad, planes), jnp.float32),
        grid=grid, in_specs=in_specs,
        out_specs=pl.BlockSpec((tile, planes), lambda i: (i, 0)),
        compiler_params=_parallel_params(),
    )(*pieces16, *w_pieces16, b3, residual_f32)


# ----------------------------------------------------------------------------
# Kernel-map construction (glue): packed-key sort + searchsorted lookup.
# Missing neighbors map to index Np, a zero row appended to the feature table.
# ----------------------------------------------------------------------------
def _pack_keys(bxyz, span):
    b = bxyz[..., 0]
    x = bxyz[..., 1] + 1   # +1 so coord-1 stays non-negative
    y = bxyz[..., 2] + 1
    z = bxyz[..., 3] + 1
    return ((b * span + x) * span + y) * span + z


def build_kernel_map(coords, offsets, n_valid):
    """nbr_idx[Np, K]: for each point and kernel offset, the row index of the input
    point at (coord + offset) in the same batch, or Np if absent."""
    n_pad = coords.shape[0]
    k = offsets.shape[0]
    span = coords[:, 1:].max() + 3   # bounds coord + offset + 1 for injective packing
    # TODO(synk): use 64-bit keys for very large spatial extents / batch sizes.
    valid = jnp.arange(n_pad) < n_valid
    keys = jnp.where(valid, _pack_keys(coords, span), jnp.int32(2**31 - 1))
    order = jnp.argsort(keys)
    skeys = keys[order]

    off4 = jnp.concatenate(
        [jnp.zeros((k, 1), jnp.int32), offsets.astype(jnp.int32)], axis=1)
    q = coords[:, None, :] + off4[None, :, :]                    # [Np, K, 4]
    qkeys = jnp.where(valid[:, None], _pack_keys(q, span), jnp.int32(-1))
    flat = qkeys.reshape(-1)
    pos = jnp.clip(jnp.searchsorted(skeys, flat), 0, n_pad - 1)
    hit = skeys[pos] == flat
    idx = jnp.where(hit, order[pos].astype(jnp.int32), jnp.int32(n_pad))
    return idx.reshape(n_pad, k)


def gather_neighbors(feat16, nbr_idx, width):
    """27-neighbor gather; missing neighbors hit the appended zero row (bf16 traffic)."""
    n_pad = feat16.shape[0]
    padded = jnp.concatenate([feat16, jnp.zeros((1, width), feat16.dtype)], axis=0)
    return padded[nbr_idx].reshape(n_pad, -1)                    # [Np, 27*width]


# ----------------------------------------------------------------------------
# Bottle2neck forward (Pallas) and pure-jnp reference with identical cast points
# ----------------------------------------------------------------------------
def _forward_pallas(params, feat, coords, offsets, width, scale):
    n, cin = feat.shape
    planes = params["conv3_w"].shape[1]
    assert cin == planes, "downsample=None requires inplanes == planes (expansion=1)"
    n_pad = _round_up(max(n, _ROW_ALIGN), _ROW_ALIGN)
    feat_p = jnp.pad(feat.astype(jnp.float32), ((0, n_pad - n), (0, 0)))
    coords_p = jnp.pad(coords, ((0, n_pad - n), (0, 0)))
    nbr_idx = build_kernel_map(coords_p, offsets, n_valid=n)

    nums = 1 if scale == 1 else scale - 1
    tile = _pick_row_tile(n_pad)
    grid = (n_pad // tile,)

    # conv1 (1x1) + bn1 + relu, emitted directly as `scale` channel splits
    w1, b1 = fold_bn_into_weight(params["conv1_w"], *params["bn1"])
    spx = list(conv1_split(feat_p.astype(jnp.bfloat16), w1, b1, width, scale, tile, grid))

    # Res2Net group convs (kernel_size=3, stride=1); features_at_coordinates == identity
    pieces = []
    sp_in = spx[0]
    for i in range(nums):
        gathered = gather_neighbors(sp_in, nbr_idx, width)
        wc, bc = fold_bn_into_weight(params["convs_w"][i].reshape(-1, width),
                                     *params["norms"][i])
        if i + 1 < nums:
            sp, sp_in = group_conv(gathered, wc, bc, spx[i + 1], tile, grid)
        else:
            sp = group_conv(gathered, wc, bc, None, tile, grid)
        pieces.append(sp)
    if scale != 1:
        pieces.append(spx[scale - 1])     # stype=='normal': untouched last split

    # conv3 (1x1) + bn3 + residual add + relu (downsample=None, no_relu=False)
    w3, b3 = fold_bn_into_weight(params["conv3_w"], *params["bn3"])
    w3_pieces = [w3[j * width:(j + 1) * width, :] for j in range(len(pieces))]
    out = conv3_fused(pieces, w3_pieces, b3, feat_p, tile, grid)
    return out[:n]


def _forward_reference(params, feat, coords, offsets, width, scale):
    n, cin = feat.shape
    n_pad = _round_up(max(n, _ROW_ALIGN), _ROW_ALIGN)
    feat_p = jnp.pad(feat.astype(jnp.float32), ((0, n_pad - n), (0, 0)))
    coords_p = jnp.pad(coords, ((0, n_pad - n), (0, 0)))
    nbr_idx = build_kernel_map(coords_p, offsets, n_valid=n)
    nums = 1 if scale == 1 else scale - 1

    w1, b1 = fold_bn_into_weight(params["conv1_w"], *params["bn1"])
    y1 = jnp.maximum(jnp.dot(feat_p.astype(jnp.bfloat16), w1,
                             preferred_element_type=jnp.float32) + b1, 0.0)
    spx = [y1[:, j * width:(j + 1) * width].astype(jnp.bfloat16) for j in range(scale)]

    pieces = []
    sp_in = spx[0]
    for i in range(nums):
        gathered = gather_neighbors(sp_in, nbr_idx, width)
        wc, bc = fold_bn_into_weight(params["convs_w"][i].reshape(-1, width),
                                     *params["norms"][i])
        y = jnp.maximum(jnp.dot(gathered, wc, preferred_element_type=jnp.float32) + bc, 0.0)
        pieces.append(y.astype(jnp.bfloat16))
        if i + 1 < nums:
            sp_in = (y + spx[i + 1].astype(jnp.float32)).astype(jnp.bfloat16)
    if scale != 1:
        pieces.append(spx[scale - 1])

    w3, b3 = fold_bn_into_weight(params["conv3_w"], *params["bn3"])
    acc = b3 + feat_p
    for j, p in enumerate(pieces):
        acc = acc + jnp.dot(p, w3[j * width:(j + 1) * width, :],
                            preferred_element_type=jnp.float32)
    return jnp.maximum(acc, 0.0)[:n]


@functools.partial(jax.jit, static_argnames=("width", "scale"))
def bottle2neck_forward(params, feat, coords, offsets, width, scale):
    return _forward_pallas(params, feat, coords, offsets, width, scale)


@functools.partial(jax.jit, static_argnames=("width", "scale"))
def bottle2neck_reference(params, feat, coords, offsets, width, scale):
    return _forward_reference(params, feat, coords, offsets, width, scale)


# ----------------------------------------------------------------------------
# Deterministic parameter / input construction
# ----------------------------------------------------------------------------
def init_params(key, inplanes, planes, base_width=26, scale=4, kernel_volume=27):
    width = int(math.floor(planes * (base_width / 64.0)))
    ks = jax.random.split(key, 16)

    def bn_params(k, c):
        k1, k2, k3, k4 = jax.random.split(k, 4)
        gamma = jax.random.uniform(k1, (c,), jnp.float32, 0.5, 1.5)
        beta = 0.1 * jax.random.normal(k2, (c,), jnp.float32)
        mean = 0.1 * jax.random.normal(k3, (c,), jnp.float32)
        var = jax.random.uniform(k4, (c,), jnp.float32, 0.5, 1.5)
        return gamma, beta, mean, var

    nums = 1 if scale == 1 else scale - 1
    return {
        "conv1_w": 0.1 * jax.random.normal(ks[0], (inplanes, width * scale), jnp.float32),
        "bn1": bn_params(ks[1], width * scale),
        "convs_w": [0.1 * jax.random.normal(ks[2 + i], (kernel_volume, width, width),
                                            jnp.float32) for i in range(nums)],
        "norms": [bn_params(ks[6 + i], width) for i in range(nums)],
        "conv3_w": 0.1 * jax.random.normal(ks[10], (width * scale, planes), jnp.float32),
        "bn3": bn_params(ks[11], planes),
    }


def make_sparse_input(key, n_per_batch=32, batch=2, grid=4, channels=16):
    kc, kf = jax.random.split(key)
    g = jnp.arange(grid)
    full = jnp.stack(jnp.meshgrid(g, g, g, indexing="ij"), -1).reshape(-1, 3).astype(jnp.int32)
    coords_list = []
    keys = jax.random.split(kc, batch)
    for b in range(batch):
        sel = jax.random.permutation(keys[b], full.shape[0])[:n_per_batch]
        c = full[sel]
        bcol = jnp.full((n_per_batch, 1), b, jnp.int32)
        coords_list.append(jnp.concatenate([bcol, c], axis=1))
    coords = jnp.concatenate(coords_list, axis=0)                      # [N, 4]
    feats = jax.random.normal(kf, (coords.shape[0], channels), jnp.float32)
    return feats, coords


if __name__ == "__main__":
    key = jax.random.PRNGKey(0)
    k_param, k_data = jax.random.split(key)

    inplanes = 16
    planes = 16          # expansion = 1, downsample=None -> residual add is valid
    scale = 4
    dimension = 3
    base_width = 26
    width = int(math.floor(planes * (base_width / 64.0)))

    offsets = jnp.asarray(list(itertools.product([-1, 0, 1], repeat=dimension)),
                          dtype=jnp.int32)   # 27 kernel offsets

    params = init_params(k_param, inplanes, planes, base_width=base_width,
                         scale=scale, kernel_volume=offsets.shape[0])
    feats, coords = make_sparse_input(k_data, n_per_batch=32, batch=2, grid=4,
                                      channels=inplanes)

    out = bottle2neck_forward(params, feats, coords, offsets, width=width, scale=scale)
    out = jax.block_until_ready(out)

    ref = bottle2neck_reference(params, feats, coords, offsets, width=width, scale=scale)
    ref = jax.block_until_ready(ref)

    assert out.shape == (feats.shape[0], planes)
    assert jnp.allclose(out, ref, atol=1e-2, rtol=1e-2), "Pallas output mismatch vs reference"

    print("KERNEL_OK")
</pallas_src>

<mosaic_0001>
module attributes {stable_mosaic.version = 11 : i64} {
  func.func @_conv1_split_kernel(%arg0: i32, %arg1: memref<128x16xbf16, #tpu.memory_space<vmem>>, %arg2: memref<16x6xbf16, #tpu.memory_space<vmem>>, %arg3: memref<16x6xbf16, #tpu.memory_space<vmem>>, %arg4: memref<16x6xbf16, #tpu.memory_space<vmem>>, %arg5: memref<16x6xbf16, #tpu.memory_space<vmem>>, %arg6: memref<1x6xf32, #tpu.memory_space<vmem>>, %arg7: memref<1x6xf32, #tpu.memory_space<vmem>>, %arg8: memref<1x6xf32, #tpu.memory_space<vmem>>, %arg9: memref<1x6xf32, #tpu.memory_space<vmem>>, %arg10: memref<128x6xbf16, #tpu.memory_space<vmem>>, %arg11: memref<128x6xbf16, #tpu.memory_space<vmem>>, %arg12: memref<128x6xbf16, #tpu.memory_space<vmem>>, %arg13: memref<128x6xbf16, #tpu.memory_space<vmem>>) attributes {dimension_semantics = [#tpu.dimension_semantics<parallel>], iteration_bounds = array<i64: 1>, scalar_prefetch = 0 : i64, scratch_operands = 0 : i64, tpu.core_type = #tpu.core_type<tc>, window_params = [{transform_indices = @transform_0, window_bounds = array<i64: 128, 16>}, {pipeline_mode = #tpu.pipeline_mode<synchronous>, transform_indices = @transform_1, window_bounds = array<i64: 16, 6>}, {pipeline_mode = #tpu.pipeline_mode<synchronous>, transform_indices = @transform_2, window_bounds = array<i64: 16, 6>}, {pipeline_mode = #tpu.pipeline_mode<synchronous>, transform_indices = @transform_3, window_bounds = array<i64: 16, 6>}, {pipeline_mode = #tpu.pipeline_mode<synchronous>, transform_indices = @transform_4, window_bounds = array<i64: 16, 6>}, {pipeline_mode = #tpu.pipeline_mode<synchronous>, transform_indices = @transform_5, window_bounds = array<i64: 1, 6>}, {pipeline_mode = #tpu.pipeline_mode<synchronous>, transform_indices = @transform_6, window_bounds = array<i64: 1, 6>}, {pipeline_mode = #tpu.pipeline_mode<synchronous>, transform_indices = @transform_7, window_bounds = array<i64: 1, 6>}, {pipeline_mode = #tpu.pipeline_mode<synchronous>, transform_indices = @transform_8, window_bounds = array<i64: 1, 6>}, {transform_indices = @transform_9, window_bounds = array<i64: 128, 6>}, {transform_indices = @transform_10, window_bounds = array<i64: 128, 6>}, {transform_indices = @transform_11, window_bounds = array<i64: 128, 6>}, {transform_indices = @transform_12, window_bounds = array<i64: 128, 6>}]} {
    %c0 = arith.constant 0 : index
    %c0_0 = arith.constant 0 : index
    %0 = vector.load %arg1[%c0, %c0_0] : memref<128x16xbf16, #tpu.memory_space<vmem>>, vector<128x16xbf16>
    %c0_1 = arith.constant 0 : index
    %c0_2 = arith.constant 0 : index
    %1 = vector.load %arg2[%c0_1, %c0_2] : memref<16x6xbf16, #tpu.memory_space<vmem>>, vector<16x6xbf16>
    %cst = arith.constant dense<0.000000e+00> : vector<128x6xf32>
    %2 = tpu.matmul %0, %1, %cst {dimension_numbers = #tpu.dot_dimension_numbers<[1], [0], [0], [1], [0, 0, 1, 1], [], []>} : vector<128x16xbf16>, vector<16x6xbf16>, vector<128x6xf32> -> vector<128x6xf32>
    %c0_3 = arith.constant 0 : index
    %c0_4 = arith.constant 0 : index
    %3 = vector.load %arg6[%c0_3, %c0_4] : memref<1x6xf32, #tpu.memory_space<vmem>>, vector<1x6xf32>
    %4 = vector.broadcast %3 : vector<1x6xf32> to vector<128x6xf32>
    %5 = arith.addf %2, %4 : vector<128x6xf32>
    %cst_5 = arith.constant 0.000000e+00 : f32
    %6 = vector.broadcast %cst_5 : f32 to vector<128x6xf32>
    %7 = arith.maximumf %5, %6 : vector<128x6xf32>
    %8 = arith.truncf %7 : vector<128x6xf32> to vector<128x6xbf16>
    %c0_6 = arith.constant 0 : index
    %c0_7 = arith.constant 0 : index
    %9 = vector.load %arg10[%c0_6, %c0_7] : memref<128x6xbf16, #tpu.memory_space<vmem>>, vector<128x6xbf16>
    tpu.vector_store %arg10[%c0_6, %c0_7], %8 {strides = array<i32>} : memref<128x6xbf16, #tpu.memory_space<vmem>>, vector<128x6xbf16>,
    %c0_8 = arith.constant 0 : index
    %c0_9 = arith.constant 0 : index
    %10 = vector.load %arg3[%c0_8, %c0_9] : memref<16x6xbf16, #tpu.memory_space<vmem>>, vector<16x6xbf16>
    %cst_10 = arith.constant dense<0.000000e+00> : vector<128x6xf32>
    %11 = tpu.matmul %0, %10, %cst_10 {dimension_numbers = #tpu.dot_dimension_numbers<[1], [0], [0], [1], [0, 0, 1, 1], [], []>} : vector<128x16xbf16>, vector<16x6xbf16>, vector<128x6xf32> -> vector<128x6xf32>
    %c0_11 = arith.constant 0 : index
    %c0_12 = arith.constant 0 : index
    %12 = vector.load %arg7[%c0_11, %c0_12] : memref<1x6xf32, #tpu.memory_space<vmem>>, vector<1x6xf32>
    %13 = vector.broadcast %12 : vector<1x6xf32> to vector<128x6xf32>
    %14 = arith.addf %11, %13 : vector<128x6xf32>
    %cst_13 = arith.constant 0.000000e+00 : f32
    %15 = vector.broadcast %cst_13 : f32 to vector<128x6xf32>
    %16 = arith.maximumf %14, %15 : vector<128x6xf32>
    %17 = arith.truncf %16 : vector<128x6xf32> to vector<128x6xbf16>
    %c0_14 = arith.constant 0 : index
    %c0_15 = arith.constant 0 : index
    %18 = vector.load %arg11[%c0_14, %c0_15] : memref<128x6xbf16, #tpu.memory_space<vmem>>, vector<128x6xbf16>
    tpu.vector_store %arg11[%c0_14, %c0_15], %17 {strides = array<i32>} : memref<128x6xbf16, #tpu.memory_space<vmem>>, vector<128x6xbf16>,
    %c0_16 = arith.constant 0 : index
    %c0_17 = arith.constant 0 : index
    %19 = vector.load %arg4[%c0_16, %c0_17] : memref<16x6xbf16, #tpu.memory_space<vmem>>, vector<16x6xbf16>
    %cst_18 = arith.constant dense<0.000000e+00> : vector<128x6xf32>
    %20 = tpu.matmul %0, %19, %cst_18 {dimension_numbers = #tpu.dot_dimension_numbers<[1], [0], [0], [1], [0, 0, 1, 1], [], []>} : vector<128x16xbf16>, vector<16x6xbf16>, vector<128x6xf32> -> vector<128x6xf32>
    %c0_19 = arith.constant 0 : index
    %c0_20 = arith.constant 0 : index
    %21 = vector.load %arg8[%c0_19, %c0_20] : memref<1x6xf32, #tpu.memory_space<vmem>>, vector<1x6xf32>
    %22 = vector.broadcast %21 : vector<1x6xf32> to vector<128x6xf32>
    %23 = arith.addf %20, %22 : vector<128x6xf32>
    %cst_21 = arith.constant 0.000000e+00 : f32
    %24 = vector.broadcast %cst_21 : f32 to vector<128x6xf32>
    %25 = arith.maximumf %23, %24 : vector<128x6xf32>
    %26 = arith.truncf %25 : vector<128x6xf32> to vector<128x6xbf16>
    %c0_22 = arith.constant 0 : index
    %c0_23 = arith.constant 0 : index
    %27 = vector.load %arg12[%c0_22, %c0_23] : memref<128x6xbf16, #tpu.memory_space<vmem>>, vector<128x6xbf16>
    tpu.vector_store %arg12[%c0_22, %c0_23], %26 {strides = array<i32>} : memref<128x6xbf16, #tpu.memory_space<vmem>>, vector<128x6xbf16>,
    %c0_24 = arith.constant 0 : index
    %c0_25 = arith.constant 0 : index
    %28 = vector.load %arg5[%c0_24, %c0_25] : memref<16x6xbf16, #tpu.memory_space<vmem>>, vector<16x6xbf16>
    %cst_26 = arith.constant dense<0.000000e+00> : vector<128x6xf32>
    %29 = tpu.matmul %0, %28, %cst_26 {dimension_numbers = #tpu.dot_dimension_numbers<[1], [0], [0], [1], [0, 0, 1, 1], [], []>} : vector<128x16xbf16>, vector<16x6xbf16>, vector<128x6xf32> -> vector<128x6xf32>
    %c0_27 = arith.constant 0 : index
    %c0_28 = arith.constant 0 : index
    %30 = vector.load %arg9[%c0_27, %c0_28] : memref<1x6xf32, #tpu.memory_space<vmem>>, vector<1x6xf32>
    %31 = vector.broadcast %30 : vector<1x6xf32> to vector<128x6xf32>
    %32 = arith.addf %29, %31 : vector<128x6xf32>
    %cst_29 = arith.constant 0.000000e+00 : f32
    %33 = vector.broadcast %cst_29 : f32 to vector<128x6xf32>
    %34 = arith.maximumf %32, %33 : vector<128x6xf32>
    %35 = arith.truncf %34 : vector<128x6xf32> to vector<128x6xbf16>
    %c0_30 = arith.constant 0 : index
    %c0_31 = arith.constant 0 : index
    %36 = vector.load %arg13[%c0_30, %c0_31] : memref<128x6xbf16, #tpu.memory_space<vmem>>, vector<128x6xbf16>
    tpu.vector_store %arg13[%c0_30, %c0_31], %35 {strides = array<i32>} : memref<128x6xbf16, #tpu.memory_space<vmem>>, vector<128x6xbf16>,
    return
  }
  func.func @transform_0(%arg0: i32) -> (i32, i32) {
    %c0_i32 = arith.constant 0 : i32
    %c0_i32_0 = arith.constant 0 : i32
    return %arg0, %c0_i32 : i32, i32
  }
  func.func @transform_1(%arg0: i32) -> (i32, i32) {
    %c0_i32 = arith.constant 0 : i32
    %c0_i32_0 = arith.constant 0 : i32
    %c0_i32_1 = arith.constant 0 : i32
    return %c0_i32, %c0_i32_0 : i32, i32
  }
  func.func @transform_2(%arg0: i32) -> (i32, i32) {
    %c0_i32 = arith.constant 0 : i32
    %c0_i32_0 = arith.constant 0 : i32
    %c0_i32_1 = arith.constant 0 : i32
    return %c0_i32, %c0_i32_0 : i32, i32
  }
  func.func @transform_3(%arg0: i32) -> (i32, i32) {
    %c0_i32 = arith.constant 0 : i32
    %c0_i32_0 = arith.constant 0 : i32
    %c0_i32_1 = arith.constant 0 : i32
    return %c0_i32, %c0_i32_0 : i32, i32
  }
  func.func @transform_4(%arg0: i32) -> (i32, i32) {
    %c0_i32 = arith.constant 0 : i32
    %c0_i32_0 = arith.constant 0 : i32
    %c0_i32_1 = arith.constant 0 : i32
    return %c0_i32, %c0_i32_0 : i32, i32
  }
  func.func @transform_5(%arg0: i32) -> (i32, i32) {
    %c0_i32 = arith.constant 0 : i32
    %c0_i32_0 = arith.constant 0 : i32
    %c0_i32_1 = arith.constant 0 : i32
    return %c0_i32, %c0_i32_0 : i32, i32
  }
  func.func @transform_6(%arg0: i32) -> (i32, i32) {
    %c0_i32 = arith.constant 0 : i32
    %c0_i32_0 = arith.constant 0 : i32
    %c0_i32_1 = arith.constant 0 : i32
    return %c0_i32, %c0_i32_0 : i32, i32
  }
  func.func @transform_7(%arg0: i32) -> (i32, i32) {
    %c0_i32 = arith.constant 0 : i32
    %c0_i32_0 = arith.constant 0 : i32
    %c0_i32_1 = arith.constant 0 : i32
    return %c0_i32, %c0_i32_0 : i32, i32
  }
  func.func @transform_8(%arg0: i32) -> (i32, i32) {
    %c0_i32 = arith.constant 0 : i32
    %c0_i32_0 = arith.constant 0 : i32
    %c0_i32_1 = arith.constant 0 : i32
    return %c0_i32, %c0_i32_0 : i32, i32
  }
  func.func @transform_9(%arg0: i32) -> (i32, i32) {
    %c0_i32 = arith.constant 0 : i32
    %c0_i32_0 = arith.constant 0 : i32
    return %arg0, %c0_i32 : i32, i32
  }
  func.func @transform_10(%arg0: i32) -> (i32, i32) {
    %c0_i32 = arith.constant 0 : i32
    %c0_i32_0 = arith.constant 0 : i32
    return %arg0, %c0_i32 : i32, i32
  }
  func.func @transform_11(%arg0: i32) -> (i32, i32) {
    %c0_i32 = arith.constant 0 : i32
    %c0_i32_0 = arith.constant 0 : i32
    return %arg0, %c0_i32 : i32, i32
  }
  func.func @transform_12(%arg0: i32) -> (i32, i32) {
    %c0_i32 = arith.constant 0 : i32
    %c0_i32_0 = arith.constant 0 : i32
    return %arg0, %c0_i32 : i32, i32
  }
}

module attributes {stable_mosaic.version = 11 : i64} {
  func.func @_group_conv_kernel(%arg0: i32, %arg1: memref<128x162xbf16, #tpu.memory_space<vmem>>, %arg2: memref<162x6xbf16, #tpu.memory_space<vmem>>, %arg3: memref<1x6xf32, #tpu.memory_space<vmem>>, %arg4: memref<128x6xbf16, #tpu.memory_space<vmem>>, %arg5: memref<128x6xbf16, #tpu.memory_space<vmem>>, %arg6: memref<128x6xbf16, #tpu.memory_space<vmem>>) attributes {dimension_semantics = [#tpu.dimension_semantics<parallel>], iteration_bounds = array<i64: 1>, scalar_prefetch = 0 : i64, scratch_operands = 0 : i64, tpu.core_type = #tpu.core_type<tc>, window_params = [{transform_indices = @transform_0, window_bounds = array<i64: 128, 162>}, {pipeline_mode = #tpu.pipeline_mode<synchronous>, transform_indices = @transform_1, window_bounds = array<i64: 162, 6>}, {pipeline_mode = #tpu.pipeline_mode<synchronous>, transform_indices = @transform_2, window_bounds = array<i64: 1, 6>}, {transform_indices = @transform_3, window_bounds = array<i64: 128, 6>}, {transform_indices = @transform_4, window_bounds = array<i64: 128, 6>}, {transform_indices = @transform_5, window_bounds = array<i64: 128, 6>}]} {
    %c0 = arith.constant 0 : index
    %c0_0 = arith.constant 0 : index
    %0 = vector.load %arg1[%c0, %c0_0] : memref<128x162xbf16, #tpu.memory_space<vmem>>, vector<128x162xbf16>
    %c0_1 = arith.constant 0 : index
    %c0_2 = arith.constant 0 : index
    %1 = vector.load %arg2[%c0_1, %c0_2] : memref<162x6xbf16, #tpu.memory_space<vmem>>, vector<162x6xbf16>
    %cst = arith.constant dense<0.000000e+00> : vector<128x6xf32>
    %2 = tpu.matmul %0, %1, %cst {dimension_numbers = #tpu.dot_dimension_numbers<[1], [0], [0], [1], [0, 0, 1, 1], [], []>} : vector<128x162xbf16>, vector<162x6xbf16>, vector<128x6xf32> -> vector<128x6xf32>
    %c0_3 = arith.constant 0 : index
    %c0_4 = arith.constant 0 : index
    %3 = vector.load %arg3[%c0_3, %c0_4] : memref<1x6xf32, #tpu.memory_space<vmem>>, vector<1x6xf32>
    %4 = vector.broadcast %3 : vector<1x6xf32> to vector<128x6xf32>
    %5 = arith.addf %2, %4 : vector<128x6xf32>
    %cst_5 = arith.constant 0.000000e+00 : f32
    %6 = vector.broadcast %cst_5 : f32 to vector<128x6xf32>
    %7 = arith.maximumf %5, %6 : vector<128x6xf32>
    %8 = arith.truncf %7 : vector<128x6xf32> to vector<128x6xbf16>
    %c0_6 = arith.constant 0 : index
    %c0_7 = arith.constant 0 : index
    %9 = vector.load %arg5[%c0_6, %c0_7] : memref<128x6xbf16, #tpu.memory_space<vmem>>, vector<128x6xbf16>
    tpu.vector_store %arg5[%c0_6, %c0_7], %8 {strides = array<i32>} : memref<128x6xbf16, #tpu.memory_space<vmem>>, vector<128x6xbf16>,
    %c0_8 = arith.constant 0 : index
    %c0_9 = arith.constant 0 : index
    %10 = vector.load %arg4[%c0_8, %c0_9] : memref<128x6xbf16, #tpu.memory_space<vmem>>, vector<128x6xbf16>
    %11 = arith.extf %10 : vector<128x6xbf16> to vector<128x6xf32>
    %12 = arith.addf %7, %11 : vector<128x6xf32>
    %13 = arith.truncf %12 : vector<128x6xf32> to vector<128x6xbf16>
    %c0_10 = arith.constant 0 : index
    %c0_11 = arith.constant 0 : index
    %14 = vector.load %arg6[%c0_10, %c0_11] : memref<128x6xbf16, #tpu.memory_space<vmem>>, vector<128x6xbf16>
    tpu.vector_store %arg6[%c0_10, %c0_11], %13 {strides = array<i32>} : memref<128x6xbf16, #tpu.memory_space<vmem>>, vector<128x6xbf16>,
    return
  }
  func.func @transform_0(%arg0: i32) -> (i32, i32) {
    %c0_i32 = arith.constant 0 : i32
    %c0_i32_0 = arith.constant 0 : i32
    return %arg0, %c0_i32 : i32, i32
  }
  func.func @transform_1(%arg0: i32) -> (i32, i32) {
    %c0_i32 = arith.constant 0 : i32
    %c0_i32_0 = arith.constant 0 : i32
    %c0_i32_1 = arith.constant 0 : i32
    return %c0_i32, %c0_i32_0 : i32, i32
  }
  func.func @transform_2(%arg0: i32) -> (i32, i32) {
    %c0_i32 = arith.constant 0 : i32
    %c0_i32_0 = arith.constant 0 : i32
    %c0_i32_1 = arith.constant 0 : i32
    return %c0_i32, %c0_i32_0 : i32, i32
  }
  func.func @transform_3(%arg0: i32) -> (i32, i32) {
    %c0_i32 = arith.constant 0 : i32
    %c0_i32_0 = arith.constant 0 : i32
    return %arg0, %c0_i32 : i32, i32
  }
  func.func @transform_4(%arg0: i32) -> (i32, i32) {
    %c0_i32 = arith.constant 0 : i32
    %c0_i32_0 = arith.constant 0 : i32
    return %arg0, %c0_i32 : i32, i32
  }
  func.func @transform_5(%arg0: i32) -> (i32, i32) {
    %c0_i32 = arith.constant 0 : i32
    %c0_i32_0 = arith.constant 0 : i32
    return %arg0, %c0_i32 : i32, i32
  }
}

module attributes {stable_mosaic.version = 11 : i64} {
  func.func @_group_conv_last_kernel(%arg0: i32, %arg1: memref<128x162xbf16, #tpu.memory_space<vmem>>, %arg2: memref<162x6xbf16, #tpu.memory_space<vmem>>, %arg3: memref<1x6xf32, #tpu.memory_space<vmem>>, %arg4: memref<128x6xbf16, #tpu.memory_space<vmem>>) attributes {dimension_semantics = [#tpu.dimension_semantics<parallel>], iteration_bounds = array<i64: 1>, scalar_prefetch = 0 : i64, scratch_operands = 0 : i64, tpu.core_type = #tpu.core_type<tc>, window_params = [{transform_indices = @transform_0, window_bounds = array<i64: 128, 162>}, {pipeline_mode = #tpu.pipeline_mode<synchronous>, transform_indices = @transform_1, window_bounds = array<i64: 162, 6>}, {pipeline_mode = #tpu.pipeline_mode<synchronous>, transform_indices = @transform_2, window_bounds = array<i64: 1, 6>}, {transform_indices = @transform_3, window_bounds = array<i64: 128, 6>}]} {
    %c0 = arith.constant 0 : index
    %c0_0 = arith.constant 0 : index
    %0 = vector.load %arg1[%c0, %c0_0] : memref<128x162xbf16, #tpu.memory_space<vmem>>, vector<128x162xbf16>
    %c0_1 = arith.constant 0 : index
    %c0_2 = arith.constant 0 : index
    %1 = vector.load %arg2[%c0_1, %c0_2] : memref<162x6xbf16, #tpu.memory_space<vmem>>, vector<162x6xbf16>
    %cst = arith.constant dense<0.000000e+00> : vector<128x6xf32>
    %2 = tpu.matmul %0, %1, %cst {dimension_numbers = #tpu.dot_dimension_numbers<[1], [0], [0], [1], [0, 0, 1, 1], [], []>} : vector<128x162xbf16>, vector<162x6xbf16>, vector<128x6xf32> -> vector<128x6xf32>
    %c0_3 = arith.constant 0 : index
    %c0_4 = arith.constant 0 : index
    %3 = vector.load %arg3[%c0_3, %c0_4] : memref<1x6xf32, #tpu.memory_space<vmem>>, vector<1x6xf32>
    %4 = vector.broadcast %3 : vector<1x6xf32> to vector<128x6xf32>
    %5 = arith.addf %2, %4 : vector<128x6xf32>
    %cst_5 = arith.constant 0.000000e+00 : f32
    %6 = vector.broadcast %cst_5 : f32 to vector<128x6xf32>
    %7 = arith.maximumf %5, %6 : vector<128x6xf32>
    %8 = arith.truncf %7 : vector<128x6xf32> to vector<128x6xbf16>
    %c0_6 = arith.constant 0 : index
    %c0_7 = arith.constant 0 : index
    %9 = vector.load %arg4[%c0_6, %c0_7] : memref<128x6xbf16, #tpu.memory_space<vmem>>, vector<128x6xbf16>
    tpu.vector_store %arg4[%c0_6, %c0_7], %8 {strides = array<i32>} : memref<128x6xbf16, #tpu.memory_space<vmem>>, vector<128x6xbf16>,
    return
  }
  func.func @transform_0(%arg0: i32) -> (i32, i32) {
    %c0_i32 = arith.constant 0 : i32
    %c0_i32_0 = arith.constant 0 : i32
    return %arg0, %c0_i32 : i32, i32
  }
  func.func @transform_1(%arg0: i32) -> (i32, i32) {
    %c0_i32 = arith.constant 0 : i32
    %c0_i32_0 = arith.constant 0 : i32
    %c0_i32_1 = arith.constant 0 : i32
    return %c0_i32, %c0_i32_0 : i32, i32
  }
  func.func @transform_2(%arg0: i32) -> (i32, i32) {
    %c0_i32 = arith.constant 0 : i32
    %c0_i32_0 = arith.constant 0 : i32
    %c0_i32_1 = arith.constant 0 : i32
    return %c0_i32, %c0_i32_0 : i32, i32
  }
  func.func @transform_3(%arg0: i32) -> (i32, i32) {
    %c0_i32 = arith.constant 0 : i32
    %c0_i32_0 = arith.constant 0 : i32
    return %arg0, %c0_i32 : i32, i32
  }
}

module attributes {stable_mosaic.version = 11 : i64} {
  func.func @_conv3_kernel(%arg0: i32, %arg1: memref<128x6xbf16, #tpu.memory_space<vmem>>, %arg2: memref<128x6xbf16, #tpu.memory_space<vmem>>, %arg3: memref<128x6xbf16, #tpu.memory_space<vmem>>, %arg4: memref<128x6xbf16, #tpu.memory_space<vmem>>, %arg5: memref<6x16xbf16, #tpu.memory_space<vmem>>, %arg6: memref<6x16xbf16, #tpu.memory_space<vmem>>, %arg7: memref<6x16xbf16, #tpu.memory_space<vmem>>, %arg8: memref<6x16xbf16, #tpu.memory_space<vmem>>, %arg9: memref<1x16xf32, #tpu.memory_space<vmem>>, %arg10: memref<128x16xf32, #tpu.memory_space<vmem>>, %arg11: memref<128x16xf32, #tpu.memory_space<vmem>>) attributes {dimension_semantics = [#tpu.dimension_semantics<parallel>], iteration_bounds = array<i64: 1>, scalar_prefetch = 0 : i64, scratch_operands = 0 : i64, tpu.core_type = #tpu.core_type<tc>, window_params = [{transform_indices = @transform_0, window_bounds = array<i64: 128, 6>}, {transform_indices = @transform_1, window_bounds = array<i64: 128, 6>}, {transform_indices = @transform_2, window_bounds = array<i64: 128, 6>}, {transform_indices = @transform_3, window_bounds = array<i64: 128, 6>}, {pipeline_mode = #tpu.pipeline_mode<synchronous>, transform_indices = @transform_4, window_bounds = array<i64: 6, 16>}, {pipeline_mode = #tpu.pipeline_mode<synchronous>, transform_indices = @transform_5, window_bounds = array<i64: 6, 16>}, {pipeline_mode = #tpu.pipeline_mode<synchronous>, transform_indices = @transform_6, window_bounds = array<i64: 6, 16>}, {pipeline_mode = #tpu.pipeline_mode<synchronous>, transform_indices = @transform_7, window_bounds = array<i64: 6, 16>}, {pipeline_mode = #tpu.pipeline_mode<synchronous>, transform_indices = @transform_8, window_bounds = array<i64: 1, 16>}, {transform_indices = @transform_9, window_bounds = array<i64: 128, 16>}, {transform_indices = @transform_10, window_bounds = array<i64: 128, 16>}]} {
    %c0 = arith.constant 0 : index
    %c0_0 = arith.constant 0 : index
    %0 = vector.load %arg9[%c0, %c0_0] : memref<1x16xf32, #tpu.memory_space<vmem>>, vector<1x16xf32>
    %c0_1 = arith.constant 0 : index
    %c0_2 = arith.constant 0 : index
    %1 = vector.load %arg10[%c0_1, %c0_2] : memref<128x16xf32, #tpu.memory_space<vmem>>, vector<128x16xf32>
    %2 = vector.broadcast %0 : vector<1x16xf32> to vector<128x16xf32>
    %3 = arith.addf %2, %1 : vector<128x16xf32>
    %c0_3 = arith.constant 0 : index
    %c0_4 = arith.constant 0 : index
    %4 = vector.load %arg1[%c0_3, %c0_4] : memref<128x6xbf16, #tpu.memory_space<vmem>>, vector<128x6xbf16>
    %c0_5 = arith.constant 0 : index
    %c0_6 = arith.constant 0 : index
    %5 = vector.load %arg5[%c0_5, %c0_6] : memref<6x16xbf16, #tpu.memory_space<vmem>>, vector<6x16xbf16>
    %cst = arith.constant dense<0.000000e+00> : vector<128x16xf32>
    %6 = tpu.matmul %4, %5, %cst {dimension_numbers = #tpu.dot_dimension_numbers<[1], [0], [0], [1], [0, 0, 1, 1], [], []>} : vector<128x6xbf16>, vector<6x16xbf16>, vector<128x16xf32> -> vector<128x16xf32>
    %7 = arith.addf %3, %6 : vector<128x16xf32>
    %c0_7 = arith.constant 0 : index
    %c0_8 = arith.constant 0 : index
    %8 = vector.load %arg2[%c0_7, %c0_8] : memref<128x6xbf16, #tpu.memory_space<vmem>>, vector<128x6xbf16>
    %c0_9 = arith.constant 0 : index
    %c0_10 = arith.constant 0 : index
    %9 = vector.load %arg6[%c0_9, %c0_10] : memref<6x16xbf16, #tpu.memory_space<vmem>>, vector<6x16xbf16>
    %cst_11 = arith.constant dense<0.000000e+00> : vector<128x16xf32>
    %10 = tpu.matmul %8, %9, %cst_11 {dimension_numbers = #tpu.dot_dimension_numbers<[1], [0], [0], [1], [0, 0, 1, 1], [], []>} : vector<128x6xbf16>, vector<6x16xbf16>, vector<128x16xf32> -> vector<128x16xf32>
    %11 = arith.addf %7, %10 : vector<128x16xf32>
    %c0_12 = arith.constant 0 : index
    %c0_13 = arith.constant 0 : index
    %12 = vector.load %arg3[%c0_12, %c0_13] : memref<128x6xbf16, #tpu.memory_space<vmem>>, vector<128x6xbf16>
    %c0_14 = arith.constant 0 : index
    %c0_15 = arith.constant 0 : index
    %13 = vector.load %arg7[%c0_14, %c0_15] : memref<6x16xbf16, #tpu.memory_space<vmem>>, vector<6x16xbf16>
    %cst_16 = arith.constant dense<0.000000e+00> : vector<128x16xf32>
    %14 = tpu.matmul %12, %13, %cst_16 {dimension_numbers = #tpu.dot_dimension_numbers<[1], [0], [0], [1], [0, 0, 1, 1], [], []>} : vector<128x6xbf16>, vector<6x16xbf16>, vector<128x16xf32> -> vector<128x16xf32>
    %15 = arith.addf %11, %14 : vector<128x16xf32>
    %c0_17 = arith.constant 0 : index
    %c0_18 = arith.constant 0 : index
    %16 = vector.load %arg4[%c0_17, %c0_18] : memref<128x6xbf16, #tpu.memory_space<vmem>>, vector<128x6xbf16>
    %c0_19 = arith.constant 0 : index
    %c0_20 = arith.constant 0 : index
    %17 = vector.load %arg8[%c0_19, %c0_20] : memref<6x16xbf16, #tpu.memory_space<vmem>>, vector<6x16xbf16>
    %cst_21 = arith.constant dense<0.000000e+00> : vector<128x16xf32>
    %18 = tpu.matmul %16, %17, %cst_21 {dimension_numbers = #tpu.dot_dimension_numbers<[1], [0], [0], [1], [0, 0, 1, 1], [], []>} : vector<128x6xbf16>, vector<6x16xbf16>, vector<128x16xf32> -> vector<128x16xf32>
    %19 = arith.addf %15, %18 : vector<128x16xf32>
    %cst_22 = arith.constant 0.000000e+00 : f32
    %20 = vector.broadcast %cst_22 : f32 to vector<128x16xf32>
    %21 = arith.maximumf %19, %20 : vector<128x16xf32>
    %c0_23 = arith.constant 0 : index
    %c0_24 = arith.constant 0 : index
    %22 = vector.load %arg11[%c0_23, %c0_24] : memref<128x16xf32, #tpu.memory_space<vmem>>, vector<128x16xf32>
    tpu.vector_store %arg11[%c0_23, %c0_24], %21 {strides = array<i32>} : memref<128x16xf32, #tpu.memory_space<vmem>>, vector<128x16xf32>,
    return
  }
  func.func @transform_0(%arg0: i32) -> (i32, i32) {
    %c0_i32 = arith.constant 0 : i32
    %c0_i32_0 = arith.constant 0 : i32
    return %arg0, %c0_i32 : i32, i32
  }
  func.func @transform_1(%arg0: i32) -> (i32, i32) {
    %c0_i32 = arith.constant 0 : i32
    %c0_i32_0 = arith.constant 0 : i32
    return %arg0, %c0_i32 : i32, i32
  }
  func.func @transform_2(%arg0: i32) -> (i32, i32) {
    %c0_i32 = arith.constant 0 : i32
    %c0_i32_0 = arith.constant 0 : i32
    return %arg0, %c0_i32 : i32, i32
  }
  func.func @transform_3(%arg0: i32) -> (i32, i32) {
    %c0_i32 = arith.constant 0 : i32
    %c0_i32_0 = arith.constant 0 : i32
    return %arg0, %c0_i32 : i32, i32
  }
  func.func @transform_4(%arg0: i32) -> (i32, i32) {
    %c0_i32 = arith.constant 0 : i32
    %c0_i32_0 = arith.constant 0 : i32
    %c0_i32_1 = arith.constant 0 : i32
    return %c0_i32, %c0_i32_0 : i32, i32
  }
  func.func @transform_5(%arg0: i32) -> (i32, i32) {
    %c0_i32 = arith.constant 0 : i32
    %c0_i32_0 = arith.constant 0 : i32
    %c0_i32_1 = arith.constant 0 : i32
    return %c0_i32, %c0_i32_0 : i32, i32
  }
  func.func @transform_6(%arg0: i32) -> (i32, i32) {
    %c0_i32 = arith.constant 0 : i32
    %c0_i32_0 = arith.constant 0 : i32
    %c0_i32_1 = arith.constant 0 : i32
    return %c0_i32, %c0_i32_0 : i32, i32
  }
  func.func @transform_7(%arg0: i32) -> (i32, i32) {
    %c0_i32 = arith.constant 0 : i32
    %c0_i32_0 = arith.constant 0 : i32
    %c0_i32_1 = arith.constant 0 : i32
    return %c0_i32, %c0_i32_0 : i32, i32
  }
  func.func @transform_8(%arg0: i32) -> (i32, i32) {
    %c0_i32 = arith.constant 0 : i32
    %c0_i32_0 = arith.constant 0 : i32
    %c0_i32_1 = arith.constant 0 : i32
    return %c0_i32, %c0_i32_0 : i32, i32
  }
  func.func @transform_9(%arg0: i32) -> (i32, i32) {
    %c0_i32 = arith.constant 0 : i32
    %c0_i32_0 = arith.constant 0 : i32
    return %arg0, %c0_i32 : i32, i32
  }
  func.func @transform_10(%arg0: i32) -> (i32, i32) {
    %c0_i32 = arith.constant 0 : i32
    %c0_i32_0 = arith.constant 0 : i32
    return %arg0, %c0_i32 : i32, i32
  }
}

</mosaic_0001>

<llo_original>
// kernel: custom-call
$region0: #{custom-call}
  %s0 = inlined_call_operand.vmem [shape: u32[3456], index: 0, kind: output, shape index: {}]

// kernel: bottle2neck_forward.5
$region0: #{bottle2neck_forward.5}
  #allocation0 [shape = 'u32[]', space=smem, size = 0x4, offset = 0x4, fixed_abs, tag = 'smem constant byte address 0x4 - core index']
  #allocation1 [shape = 'u32[72,128]{1,0:T(1,128)}', space=vmem, size = 0x9000, scoped, tag = 'internal scratch']
  %s0 = inlined_call_operand.vmem [shape: bf16[128,16], index: 0, kind: input, shape index: {}]
  %s1 = inlined_call_operand.vmem [shape: bf16[16,6], index: 1, kind: input, shape index: {}]
  %s2 = inlined_call_operand.vmem [shape: bf16[16,6], index: 2, kind: input, shape index: {}]
  %s3 = inlined_call_operand.vmem [shape: bf16[16,6], index: 3, kind: input, shape index: {}]
  %s4 = inlined_call_operand.vmem [shape: bf16[16,6], index: 4, kind: input, shape index: {}]
  %s5 = inlined_call_operand.vmem [shape: f32[1,6], index: 5, kind: input, shape index: {}]
  %s6 = inlined_call_operand.vmem [shape: f32[1,6], index: 6, kind: input, shape index: {}]
  %s7 = inlined_call_operand.vmem [shape: f32[1,6], index: 7, kind: input, shape index: {}]
  %s8 = inlined_call_operand.vmem [shape: f32[1,6], index: 8, kind: input, shape index: {}]
  %s9 = inlined_call_operand.vmem [shape: bf16[128,6], index: 9, kind: output, shape index: {0}]
  %s10 = inlined_call_operand.vmem [shape: bf16[128,6], index: 10, kind: output, shape index: {1}]
  %s11 = inlined_call_operand.vmem [shape: bf16[128,6], index: 11, kind: output, shape index: {2}]
  %s12 = inlined_call_operand.vmem [shape: bf16[128,6], index: 12, kind: output, shape index: {3}]
  %13 = xla_tuple %s9, %s10, %s11, %s12
  %s14 = sld [smem:[#allocation0]]
  $region70: #{bottle2neck_forward.5} parent=0
    _
  %s16 = ssub.s32 1, %s14
  %s17 = scalar_select 0, %s16, %s14
  // Predicated region
  $region2: #{bottle2neck_forward.5} parent=0 // pred_check
    _
  $region3: #{bottle2neck_forward.5} parent=0 // pred_check_branch
    %19 = sbr.rel (0) target = $region5
  $region4: #{bottle2neck_forward.5} parent=0 // pred_region
    _
  $region5: #{bottle2neck_forward.5} parent=0 // pred_fallthru
    _
  // Predicated region
  $region6: #{bottle2neck_forward.5} parent=0 // pred_check
    _
  $region7: #{bottle2neck_forward.5} parent=0 // pred_check_branch
    %21 = sbr.rel (0) target = $region9
  $region8: #{bottle2neck_forward.5} parent=0 // pred_region
    _
  $region9: #{bottle2neck_forward.5} parent=0 // pred_fallthru
    _
  // Predicated region
  $region10: #{bottle2neck_forward.5} parent=0 // pred_check
    _
  $region11: #{bottle2neck_forward.5} parent=0 // pred_check_branch
    %23 = sbr.rel (0) target = $region13
  $region12: #{bottle2neck_forward.5} parent=0 // pred_region
    _
  $region13: #{bottle2neck_forward.5} parent=0 // pred_fallthru
    _
  // Predicated region
  $region14: #{bottle2neck_forward.5} parent=0 // pred_check
    _
  $region15: #{bottle2neck_forward.5} parent=0 // pred_check_branch
    %25 = sbr.rel (0) target = $region17
  $region16: #{bottle2neck_forward.5} parent=0 // pred_region
    _
  $region17: #{bottle2neck_forward.5} parent=0 // pred_fallthru
    _
  // Predicated region
  $region18: #{bottle2neck_forward.5} parent=0 // pred_check
    _
  $region19: #{bottle2neck_forward.5} parent=0 // pred_check_branch
    %27 = sbr.rel (0) target = $region21
  $region20: #{bottle2neck_forward.5} parent=0 // pred_region
    _
  $region21: #{bottle2neck_forward.5} parent=0 // pred_fallthru
    _
  // Predicated region
  $region22: #{bottle2neck_forward.5} parent=0 // pred_check
    _
  $region23: #{bottle2neck_forward.5} parent=0 // pred_check_branch
    %29 = sbr.rel (0) target = $region25
  $region24: #{bottle2neck_forward.5} parent=0 // pred_region
    _
  $region25: #{bottle2neck_forward.5} parent=0 // pred_fallthru
    _
  // Predicated region
  $region26: #{bottle2neck_forward.5} parent=0 // pred_check
    _
  $region27: #{bottle2neck_forward.5} parent=0 // pred_check_branch
    %31 = sbr.rel (0) target = $region29
  $region28: #{bottle2neck_forward.5} parent=0 // pred_region
    _
  $region29: #{bottle2neck_forward.5} parent=0 // pred_fallthru
    _
  // Predicated region
  $region30: #{bottle2neck_forward.5} parent=0 // pred_check
    _
  $region31: #{bottle2neck_forward.5} parent=0 // pred_check_branch
    %33 = sbr.rel (0) target = $region33
  $region32: #{bottle2neck_forward.5} parent=0 // pred_region
    _
  $region33: #{bottle2neck_forward.5} parent=0 // pred_fallthru
    _
  // Predicated region
  $region34: #{bottle2neck_forward.5} parent=0 // pred_check
    _
  $region35: #{bottle2neck_forward.5} parent=0 // pred_check_branch
    %35 = sbr.rel (0) target = $region37
  $region36: #{bottle2neck_forward.5} parent=0 // pred_region
    _
  $region37: #{bottle2neck_forward.5} parent=0 // pred_fallthru
    _
  %v37 = vld [vmem:[%s0] sm:$0xf]
  %v38 = vld [vmem:[%s0 + $0x4] sm:$0xf]
  %v39 = vld [vmem:[%s0 + $0x8] sm:$0xf]
  %v40 = vld [vmem:[%s0 + $0xc] sm:$0xf]
  %v41 = vld [vmem:[%s0 + $0x10] sm:$0xf]
  %v42 = vld [vmem:[%s0 + $0x14] sm:$0xf]
  %v43 = vld [vmem:[%s0 + $0x18] sm:$0xf]
  %v44 = vld [vmem:[%s0 + $0x1c] sm:$0xf]
  %v45 = vld [vmem:[%s0 + $0x20] sm:$0xf]
  %v46 = vld [vmem:[%s0 + $0x24] sm:$0xf]
  %v47 = vld [vmem:[%s0 + $0x28] sm:$0xf]
  %v48 = vld [vmem:[%s0 + $0x2c] sm:$0xf]
  %v49 = vld [vmem:[%s0 + $0x30] sm:$0xf]
  %v50 = vld [vmem:[%s0 + $0x34] sm:$0xf]
  %v51 = vld [vmem:[%s0 + $0x38] sm:$0xf]
  %v52 = vld [vmem:[%s0 + $0x3c] sm:$0xf]
  %v53 = vld [vmem:[%s1] sm:$0xf]
  %v54 = vld [vmem:[%s1 + $0x4] sm:$0xf]
  %v55 = vld [vmem:[%s5] sm:$0x1]
  %v57 = vperm.slane %v55, 0
  %v75 = vunpack.c.l.b16 %v37
  %v76 = vunpack.c.l.b16 %v38
  %v77 = vunpack.c.l.b16 %v39
  %v78 = vunpack.c.l.b16 %v40
  %v79 = vunpack.c.l.b16 %v41
  %v80 = vunpack.c.l.b16 %v42
  %v81 = vunpack.c.l.b16 %v43
  %v82 = vunpack.c.l.b16 %v44
  %v83 = vunpack.c.l.b16 %v45
  %v84 = vunpack.c.l.b16 %v46
  %v85 = vunpack.c.l.b16 %v47
  %v86 = vunpack.c.l.b16 %v48
  %v87 = vunpack.c.l.b16 %v49
  %v88 = vunpack.c.l.b16 %v50
  %v89 = vunpack.c.l.b16 %v51
  %v90 = vunpack.c.l.b16 %v52
  %v91 = vpack.c.b16 %v76, %v75
  %v92 = vpack.c.b16 %v78, %v77
  %v93 = vpack.c.b16 %v80, %v79
  %v94 = vpack.c.b16 %v82, %v81
  %v95 = vpack.c.b16 %v84, %v83
  %v96 = vpack.c.b16 %v86, %v85
  %v97 = vpack.c.b16 %v88, %v87
  %v98 = vpack.c.b16 %v90, %v89
  %v101 = vunpack.c.l.b16 %v53
  %v102 = vunpack.c.l.b16 %v54
  %v103 = vpack.c.b16 %v102, %v101
  %vm105 = vcmask 130048
  %v107 = vsel %vm105, %v91, 0
  %v110 = vsel %vm105, %v92, 0
  %v113 = vsel %vm105, %v93, 0
  %v116 = vsel %vm105, %v94, 0
  %v119 = vsel %vm105, %v95, 0
  %v122 = vsel %vm105, %v96, 0
  %v125 = vsel %vm105, %v97, 0
  %v128 = vsel %vm105, %v98, 0
  %130 = vmatpush.bf16.msra.mxu0 0
  %131 = vmatpush.bf16.msra.mxu0 0
  %132 = vmatpush.bf16.msra.mxu0 0
  %133 = vmatpush.bf16.msra.mxu0 0
  %134 = vmatpush.bf16.msra.mxu0 0
  %135 = vmatpush.bf16.msra.mxu0 0
  %136 = vmatpush.bf16.msra.mxu0 0
  %137 = vmatpush.bf16.msra.mxu0 %v103
  %138 = vmatmul.bf16.gmra.mxu0 %v107
  %v139 = vpop.f32.mrf.mxu0
  %v140 = vadd.f32 %v57, %v139
  %v141 = vpop.f32.mrf.mxu0
  %v142 = vadd.f32 %v57, %v141
  %143 = vmatmul.bf16.gmra.mxu0 %v110
  %v144 = vpop.f32.mrf.mxu0
  %v145 = vadd.f32 %v57, %v144
  %v146 = vpop.f32.mrf.mxu0
  %v147 = vadd.f32 %v57, %v146
  %148 = vmatmul.bf16.gmra.mxu0 %v113
  %v149 = vpop.f32.mrf.mxu0
  %v150 = vadd.f32 %v57, %v149
  %v151 = vpop.f32.mrf.mxu0
  %v152 = vadd.f32 %v57, %v151
  %153 = vmatmul.bf16.gmra.mxu0 %v116
  %v154 = vpop.f32.mrf.mxu0
  %v155 = vadd.f32 %v57, %v154
  %v156 = vpop.f32.mrf.mxu0
  %v157 = vadd.f32 %v57, %v156
  %158 = vmatmul.bf16.gmra.mxu0 %v119
  %v159 = vpop.f32.mrf.mxu0
  %v160 = vadd.f32 %v57, %v159
  %v161 = vpop.f32.mrf.mxu0
  %v162 = vadd.f32 %v57, %v161
  %163 = vmatmul.bf16.gmra.mxu0 %v122
  %v164 = vpop.f32.mrf.mxu0
  %v165 = vadd.f32 %v57, %v164
  %v166 = vpop.f32.mrf.mxu0
  %v167 = vadd.f32 %v57, %v166
  %168 = vmatmul.bf16.gmra.mxu0 %v125
  %v169 = vpop.f32.mrf.mxu0
  %v170 = vadd.f32 %v57, %v169
  %v171 = vpop.f32.mrf.mxu0
  %v172 = vadd.f32 %v57, %v171
  %173 = vmatmul.bf16.gmra.mxu0 %v128
  %v174 = vpop.f32.mrf.mxu0
  %v175 = vadd.f32 %v57, %v174
  %v176 = vpop.f32.mrf.mxu0
  %v177 = vadd.f32 %v57, %v176
  %178 = vdwg.mxu0
  %v179 = vmax.f32 %v140, 0.0
  %v180 = vmax.f32 %v142, 0.0
  %v181 = vmax.f32 %v145, 0.0
  %v182 = vmax.f32 %v147, 0.0
  %v183 = vmax.f32 %v150, 0.0
  %v184 = vmax.f32 %v152, 0.0
  %v185 = vmax.f32 %v155, 0.0
  %v186 = vmax.f32 %v157, 0.0
  %v187 = vmax.f32 %v160, 0.0
  %v188 = vmax.f32 %v162, 0.0
  %v189 = vmax.f32 %v165, 0.0
  %v190 = vmax.f32 %v167, 0.0
  %v191 = vmax.f32 %v170, 0.0
  %v192 = vmax.f32 %v172, 0.0
  %v193 = vmax.f32 %v175, 0.0
  %v194 = vmax.f32 %v177, 0.0
  %v195 = vpack.c.bf16 %v179, %v179
  %v196 = vpack.c.bf16 %v180, %v180
  %v197 = vpack.c.bf16 %v181, %v181
  %v198 = vpack.c.bf16 %v182, %v182
  %v199 = vpack.c.bf16 %v183, %v183
  %v200 = vpack.c.bf16 %v184, %v184
  %v201 = vpack.c.bf16 %v185, %v185
  %v202 = vpack.c.bf16 %v186, %v186
  %v203 = vpack.c.bf16 %v187, %v187
  %v204 = vpack.c.bf16 %v188, %v188
  %v205 = vpack.c.bf16 %v189, %v189
  %v206 = vpack.c.bf16 %v190, %v190
  %v207 = vpack.c.bf16 %v191, %v191
  %v208 = vpack.c.bf16 %v192, %v192
  %v209 = vpack.c.bf16 %v193, %v193
  %v210 = vpack.c.bf16 %v194, %v194
  %vm211 = vcmask 44032
  %212 = vst.msk [vmem:[%s9] sm:$0xf] %vm211, %v195
  %213 = vst.msk [vmem:[%s9 + $0x4] sm:$0xf] %vm211, %v196
  %214 = vst.msk [vmem:[%s9 + $0x8] sm:$0xf] %vm211, %v197
  %215 = vst.msk [vmem:[%s9 + $0xc] sm:$0xf] %vm211, %v198
  %216 = vst.msk [vmem:[%s9 + $0x10] sm:$0xf] %vm211, %v199
  %217 = vst.msk [vmem:[%s9 + $0x14] sm:$0xf] %vm211, %v200
  %218 = vst.msk [vmem:[%s9 + $0x18] sm:$0xf] %vm211, %v201
  %219 = vst.msk [vmem:[%s9 + $0x1c] sm:$0xf] %vm211, %v202
  %220 = vst.msk [vmem:[%s9 + $0x20] sm:$0xf] %vm211, %v203
  %221 = vst.msk [vmem:[%s9 + $0x24] sm:$0xf] %vm211, %v204
  %222 = vst.msk [vmem:[%s9 + $0x28] sm:$0xf] %vm211, %v205
  %223 = vst.msk [vmem:[%s9 + $0x2c] sm:$0xf] %vm211, %v206
  %224 = vst.msk [vmem:[%s9 + $0x30] sm:$0xf] %vm211, %v207
  %225 = vst.msk [vmem:[%s9 + $0x34] sm:$0xf] %vm211, %v208
  %226 = vst.msk [vmem:[%s9 + $0x38] sm:$0xf] %vm211, %v209
  %227 = vst.msk [vmem:[%s9 + $0x3c] sm:$0xf] %vm211, %v210
  %v228 = vld [vmem:[%s2] sm:$0xf]
  %v229 = vld [vmem:[%s2 + $0x4] sm:$0xf]
  %v230 = vld [vmem:[%s6] sm:$0x1]
  %v232 = vperm.slane %v230, 0
  %v236 = vunpack.c.l.b16 %v228
  %v237 = vunpack.c.l.b16 %v229
  %v238 = vpack.c.b16 %v237, %v236
  %240 = vmatpush.bf16.msra.mxu0 0
  %241 = vmatpush.bf16.msra.mxu0 0
  %242 = vmatpush.bf16.msra.mxu0 0
  %243 = vmatpush.bf16.msra.mxu0 0
  %244 = vmatpush.bf16.msra.mxu0 0
  %245 = vmatpush.bf16.msra.mxu0 0
  %246 = vmatpush.bf16.msra.mxu0 0
  %247 = vmatpush.bf16.msra.mxu0 %v238
  %248 = vmatmul.bf16.gmra.mxu0 %v107
  %v249 = vpop.f32.mrf.mxu0
  %v250 = vadd.f32 %v232, %v249
  %v251 = vpop.f32.mrf.mxu0
  %v252 = vadd.f32 %v232, %v251
  %253 = vmatmul.bf16.gmra.mxu0 %v110
  %v254 = vpop.f32.mrf.mxu0
  %v255 = vadd.f32 %v232, %v254
  %v256 = vpop.f32.mrf.mxu0
  %v257 = vadd.f32 %v232, %v256
  %258 = vmatmul.bf16.gmra.mxu0 %v113
  %v259 = vpop.f32.mrf.mxu0
  %v260 = vadd.f32 %v232, %v259
  %v261 = vpop.f32.mrf.mxu0
  %v262 = vadd.f32 %v232, %v261
  %263 = vmatmul.bf16.gmra.mxu0 %v116
  %v264 = vpop.f32.mrf.mxu0
  %v265 = vadd.f32 %v232, %v264
  %v266 = vpop.f32.mrf.mxu0
  %v267 = vadd.f32 %v232, %v266
  %268 = vmatmul.bf16.gmra.mxu0 %v119
  %v269 = vpop.f32.mrf.mxu0
  %v270 = vadd.f32 %v232, %v269
  %v271 = vpop.f32.mrf.mxu0
  %v272 = vadd.f32 %v232, %v271
  %273 = vmatmul.bf16.gmra.mxu0 %v122
  %v274 = vpop.f32.mrf.mxu0
  %v275 = vadd.f32 %v232, %v274
  %v276 = vpop.f32.mrf.mxu0
  %v277 = vadd.f32 %v232, %v276
  %278 = vmatmul.bf16.gmra.mxu0 %v125
  %v279 = vpop.f32.mrf.mxu0
  %v280 = vadd.f32 %v232, %v279
  %v281 = vpop.f32.mrf.mxu0
  %v282 = vadd.f32 %v232, %v281
  %283 = vmatmul.bf16.gmra.mxu0 %v128
  %v284 = vpop.f32.mrf.mxu0
  %v285 = vadd.f32 %v232, %v284
  %v286 = vpop.f32.mrf.mxu0
  %v287 = vadd.f32 %v232, %v286
  %288 = vdwg.mxu0
  %v289 = vmax.f32 %v250, 0.0
  %v290 = vmax.f32 %v252, 0.0
  %v291 = vmax.f32 %v255, 0.0
  %v292 = vmax.f32 %v257, 0.0
  %v293 = vmax.f32 %v260, 0.0
  %v294 = vmax.f32 %v262, 0.0
  %v295 = vmax.f32 %v265, 0.0
  %v296 = vmax.f32 %v267, 0.0
  %v297 = vmax.f32 %v270, 0.0
  %v298 = vmax.f32 %v272, 0.0
  %v299 = vmax.f32 %v275, 0.0
  %v300 = vmax.f32 %v277, 0.0
  %v301 = vmax.f32 %v280, 0.0
  %v302 = vmax.f32 %v282, 0.0
  %v303 = vmax.f32 %v285, 0.0
  %v304 = vmax.f32 %v287, 0.0
  %v305 = vpack.c.bf16 %v289, %v289
  %v306 = vpack.c.bf16 %v290, %v290
  %v307 = vpack.c.bf16 %v291, %v291
  %v308 = vpack.c.bf16 %v292, %v292
  %v309 = vpack.c.bf16 %v293, %v293
  %v310 = vpack.c.bf16 %v294, %v294
  %v311 = vpack.c.bf16 %v295, %v295
  %v312 = vpack.c.bf16 %v296, %v296
  %v313 = vpack.c.bf16 %v297, %v297
  %v314 = vpack.c.bf16 %v298, %v298
  %v315 = vpack.c.bf16 %v299, %v299
  %v316 = vpack.c.bf16 %v300, %v300
  %v317 = vpack.c.bf16 %v301, %v301
  %v318 = vpack.c.bf16 %v302, %v302
  %v319 = vpack.c.bf16 %v303, %v303
  %v320 = vpack.c.bf16 %v304, %v304
  %321 = vst.msk [vmem:[%s10] sm:$0xf] %vm211, %v305
  %322 = vst.msk [vmem:[%s10 + $0x4] sm:$0xf] %vm211, %v306
  %323 = vst.msk [vmem:[%s10 + $0x8] sm:$0xf] %vm211, %v307
  %324 = vst.msk [vmem:[%s10 + $0xc] sm:$0xf] %vm211, %v308
  %325 = vst.msk [vmem:[%s10 + $0x10] sm:$0xf] %vm211, %v309
  %326 = vst.msk [vmem:[%s10 + $0x14] sm:$0xf] %vm211, %v310
  %327 = vst.msk [vmem:[%s10 + $0x18] sm:$0xf] %vm211, %v311
  %328 = vst.msk [vmem:[%s10 + $0x1c] sm:$0xf] %vm211, %v312
  %329 = vst.msk [vmem:[%s10 + $0x20] sm:$0xf] %vm211, %v313
  %330 = vst.msk [vmem:[%s10 + $0x24] sm:$0xf] %vm211, %v314
  %331 = vst.msk [vmem:[%s10 + $0x28] sm:$0xf] %vm211, %v315
  %332 = vst.msk [vmem:[%s10 + $0x2c] sm:$0xf] %vm211, %v316
  %333 = vst.msk [vmem:[%s10 + $0x30] sm:$0xf] %vm211, %v317
  %334 = vst.msk [vmem:[%s10 + $0x34] sm:$0xf] %vm211, %v318
  %335 = vst.msk [vmem:[%s10 + $0x38] sm:$0xf] %vm211, %v319
  %336 = vst.msk [vmem:[%s10 + $0x3c] sm:$0xf] %vm211, %v320
  %v337 = vld [vmem:[%s3] sm:$0xf]
  %v338 = vld [vmem:[%s3 + $0x4] sm:$0xf]
  %v339 = vld [vmem:[%s7] sm:$0x1]
  %v341 = vperm.slane %v339, 0
  %v345 = vunpack.c.l.b16 %v337
  %v346 = vunpack.c.l.b16 %v338
  %v347 = vpack.c.b16 %v346, %v345
  %349 = vmatpush.bf16.msra.mxu0 0
  %350 = vmatpush.bf16.msra.mxu0 0
  %351 = vmatpush.bf16.msra.mxu0 0
  %352 = vmatpush.bf16.msra.mxu0 0
  %353 = vmatpush.bf16.msra.mxu0 0
  %354 = vmatpush.bf16.msra.mxu0 0
  %355 = vmatpush.bf16.msra.mxu0 0
  %356 = vmatpush.bf16.msra.mxu0 %v347
  %357 = vmatmul.bf16.gmra.mxu0 %v107
  %v358 = vpop.f32.mrf.mxu0
  %v359 = vadd.f32 %v341, %v358
  %v360 = vpop.f32.mrf.mxu0
  %v361 = vadd.f32 %v341, %v360
  %362 = vmatmul.bf16.gmra.mxu0 %v110
  %v363 = vpop.f32.mrf.mxu0
  %v364 = vadd.f32 %v341, %v363
  %v365 = vpop.f32.mrf.mxu0
  %v366 = vadd.f32 %v341, %v365
  %367 = vmatmul.bf16.gmra.mxu0 %v113
  %v368 = vpop.f32.mrf.mxu0
  %v369 = vadd.f32 %v341, %v368
  %v370 = vpop.f32.mrf.mxu0
  %v371 = vadd.f32 %v341, %v370
  %372 = vmatmul.bf16.gmra.mxu0 %v116
  %v373 = vpop.f32.mrf.mxu0
  %v374 = vadd.f32 %v341, %v373
  %v375 = vpop.f32.mrf.mxu0
  %v376 = vadd.f32 %v341, %v375
  %377 = vmatmul.bf16.gmra.mxu0 %v119
  %v378 = vpop.f32.mrf.mxu0
  %v379 = vadd.f32 %v341, %v378
  %v380 = vpop.f32.mrf.mxu0
  %v381 = vadd.f32 %v341, %v380
  %382 = vmatmul.bf16.gmra.mxu0 %v122
  %v383 = vpop.f32.mrf.mxu0
  %v384 = vadd.f32 %v341, %v383
  %v385 = vpop.f32.mrf.mxu0
  %v386 = vadd.f32 %v341, %v385
  %387 = vmatmul.bf16.gmra.mxu0 %v125
  %v388 = vpop.f32.mrf.mxu0
  %v389 = vadd.f32 %v341, %v388
  %v390 = vpop.f32.mrf.mxu0
  %v391 = vadd.f32 %v341, %v390
  %392 = vmatmul.bf16.gmra.mxu0 %v128
  %v393 = vpop.f32.mrf.mxu0
  %v394 = vadd.f32 %v341, %v393
  %v395 = vpop.f32.mrf.mxu0
  %v396 = vadd.f32 %v341, %v395
  %397 = vdwg.mxu0
  %v398 = vmax.f32 %v359, 0.0
  %v399 = vmax.f32 %v361, 0.0
  %v400 = vmax.f32 %v364, 0.0
  %v401 = vmax.f32 %v366, 0.0
  %v402 = vmax.f32 %v369, 0.0
  %v403 = vmax.f32 %v371, 0.0
  %v404 = vmax.f32 %v374, 0.0
  %v405 = vmax.f32 %v376, 0.0
  %v406 = vmax.f32 %v379, 0.0
  %v407 = vmax.f32 %v381, 0.0
  %v408 = vmax.f32 %v384, 0.0
  %v409 = vmax.f32 %v386, 0.0
  %v410 = vmax.f32 %v389, 0.0
  %v411 = vmax.f32 %v391, 0.0
  %v412 = vmax.f32 %v394, 0.0
  %v413 = vmax.f32 %v396, 0.0
  %v414 = vpack.c.bf16 %v398, %v398
  %v415 = vpack.c.bf16 %v399, %v399
  %v416 = vpack.c.bf16 %v400, %v400
  %v417 = vpack.c.bf16 %v401, %v401
  %v418 = vpack.c.bf16 %v402, %v402
  %v419 = vpack.c.bf16 %v403, %v403
  %v420 = vpack.c.bf16 %v404, %v404
  %v421 = vpack.c.bf16 %v405, %v405
  %v422 = vpack.c.bf16 %v406, %v406
  %v423 = vpack.c.bf16 %v407, %v407
  %v424 = vpack.c.bf16 %v408, %v408
  %v425 = vpack.c.bf16 %v409, %v409
  %v426 = vpack.c.bf16 %v410, %v410
  %v427 = vpack.c.bf16 %v411, %v411
  %v428 = vpack.c.bf16 %v412, %v412
  %v429 = vpack.c.bf16 %v413, %v413
  %430 = vst.msk [vmem:[%s11] sm:$0xf] %vm211, %v414
  %431 = vst.msk [vmem:[%s11 + $0x4] sm:$0xf] %vm211, %v415
  %432 = vst.msk [vmem:[%s11 + $0x8] sm:$0xf] %vm211, %v416
  %433 = vst.msk [vmem:[%s11 + $0xc] sm:$0xf] %vm211, %v417
  %434 = vst.msk [vmem:[%s11 + $0x10] sm:$0xf] %vm211, %v418
  %435 = vst.msk [vmem:[%s11 + $0x14] sm:$0xf] %vm211, %v419
  %436 = vst.msk [vmem:[%s11 + $0x18] sm:$0xf] %vm211, %v420
  %437 = vst.msk [vmem:[%s11 + $0x1c] sm:$0xf] %vm211, %v421
  %438 = vst.msk [vmem:[%s11 + $0x20] sm:$0xf] %vm211, %v422
  %439 = vst.msk [vmem:[%s11 + $0x24] sm:$0xf] %vm211, %v423
  %440 = vst.msk [vmem:[%s11 + $0x28] sm:$0xf] %vm211, %v424
  %441 = vst.msk [vmem:[%s11 + $0x2c] sm:$0xf] %vm211, %v425
  %442 = vst.msk [vmem:[%s11 + $0x30] sm:$0xf] %vm211, %v426
  %443 = vst.msk [vmem:[%s11 + $0x34] sm:$0xf] %vm211, %v427
  %444 = vst.msk [vmem:[%s11 + $0x38] sm:$0xf] %vm211, %v428
  %445 = vst.msk [vmem:[%s11 + $0x3c] sm:$0xf] %vm211, %v429
  %v446 = vld [vmem:[%s4] sm:$0xf]
  %v447 = vld [vmem:[%s4 + $0x4] sm:$0xf]
  %v448 = vld [vmem:[%s8] sm:$0x1]
  %v450 = vperm.slane %v448, 0
  %v454 = vunpack.c.l.b16 %v446
  %v455 = vunpack.c.l.b16 %v447
  %v456 = vpack.c.b16 %v455, %v454
  %458 = vmatpush.bf16.msra.mxu0 0
  %459 = vmatpush.bf16.msra.mxu0 0
  %460 = vmatpush.bf16.msra.mxu0 0
  %461 = vmatpush.bf16.msra.mxu0 0
  %462 = vmatpush.bf16.msra.mxu0 0
  %463 = vmatpush.bf16.msra.mxu0 0
  %464 = vmatpush.bf16.msra.mxu0 0
  %465 = vmatpush.bf16.msra.mxu0 %v456
  %466 = vmatmul.bf16.gmra.mxu0 %v107
  %v467 = vpop.f32.mrf.mxu0
  %v468 = vadd.f32 %v450, %v467
  %v469 = vpop.f32.mrf.mxu0
  %v470 = vadd.f32 %v450, %v469
  %471 = vmatmul.bf16.gmra.mxu0 %v110
  %v472 = vpop.f32.mrf.mxu0
  %v473 = vadd.f32 %v450, %v472
  %v474 = vpop.f32.mrf.mxu0
  %v475 = vadd.f32 %v450, %v474
  %476 = vmatmul.bf16.gmra.mxu0 %v113
  %v477 = vpop.f32.mrf.mxu0
  %v478 = vadd.f32 %v450, %v477
  %v479 = vpop.f32.mrf.mxu0
  %v480 = vadd.f32 %v450, %v479
  %481 = vmatmul.bf16.gmra.mxu0 %v116
  %v482 = vpop.f32.mrf.mxu0
  %v483 = vadd.f32 %v450, %v482
  %v484 = vpop.f32.mrf.mxu0
  %v485 = vadd.f32 %v450, %v484
  %486 = vmatmul.bf16.gmra.mxu0 %v119
  %v487 = vpop.f32.mrf.mxu0
  %v488 = vadd.f32 %v450, %v487
  %v489 = vpop.f32.mrf.mxu0
  %v490 = vadd.f32 %v450, %v489
  %491 = vmatmul.bf16.gmra.mxu0 %v122
  %v492 = vpop.f32.mrf.mxu0
  %v493 = vadd.f32 %v450, %v492
  %v494 = vpop.f32.mrf.mxu0
  %v495 = vadd.f32 %v450, %v494
  %496 = vmatmul.bf16.gmra.mxu0 %v125
  %v497 = vpop.f32.mrf.mxu0
  %v498 = vadd.f32 %v450, %v497
  %v499 = vpop.f32.mrf.mxu0
  %v500 = vadd.f32 %v450, %v499
  %501 = vmatmul.bf16.gmra.mxu0 %v128
  %v502 = vpop.f32.mrf.mxu0
  %v503 = vadd.f32 %v450, %v502
  %v504 = vpop.f32.mrf.mxu0
  %v505 = vadd.f32 %v450, %v504
  %506 = vdwg.mxu0
  %v507 = vmax.f32 %v468, 0.0
  %v508 = vmax.f32 %v470, 0.0
  %v509 = vmax.f32 %v473, 0.0
  %v510 = vmax.f32 %v475, 0.0
  %v511 = vmax.f32 %v478, 0.0
  %v512 = vmax.f32 %v480, 0.0
  %v513 = vmax.f32 %v483, 0.0
  %v514 = vmax.f32 %v485, 0.0
  %v515 = vmax.f32 %v488, 0.0
  %v516 = vmax.f32 %v490, 0.0
  %v517 = vmax.f32 %v493, 0.0
  %v518 = vmax.f32 %v495, 0.0
  %v519 = vmax.f32 %v498, 0.0
  %v520 = vmax.f32 %v500, 0.0
  %v521 = vmax.f32 %v503, 0.0
  %v522 = vmax.f32 %v505, 0.0
  %v523 = vpack.c.bf16 %v507, %v507
  %v524 = vpack.c.bf16 %v508, %v508
  %v525 = vpack.c.bf16 %v509, %v509
  %v526 = vpack.c.bf16 %v510, %v510
  %v527 = vpack.c.bf16 %v511, %v511
  %v528 = vpack.c.bf16 %v512, %v512
  %v529 = vpack.c.bf16 %v513, %v513
  %v530 = vpack.c.bf16 %v514, %v514
  %v531 = vpack.c.bf16 %v515, %v515
  %v532 = vpack.c.bf16 %v516, %v516
  %v533 = vpack.c.bf16 %v517, %v517
  %v534 = vpack.c.bf16 %v518, %v518
  %v535 = vpack.c.bf16 %v519, %v519
  %v536 = vpack.c.bf16 %v520, %v520
  %v537 = vpack.c.bf16 %v521, %v521
  %v538 = vpack.c.bf16 %v522, %v522
  %539 = vst.msk [vmem:[%s12] sm:$0xf] %vm211, %v523
  %540 = vst.msk [vmem:[%s12 + $0x4] sm:$0xf] %vm211, %v524
  %541 = vst.msk [vmem:[%s12 + $0x8] sm:$0xf] %vm211, %v525
  %542 = vst.msk [vmem:[%s12 + $0xc] sm:$0xf] %vm211, %v526
  %543 = vst.msk [vmem:[%s12 + $0x10] sm:$0xf] %vm211, %v527
  %544 = vst.msk [vmem:[%s12 + $0x14] sm:$0xf] %vm211, %v528
  %545 = vst.msk [vmem:[%s12 + $0x18] sm:$0xf] %vm211, %v529
  %546 = vst.msk [vmem:[%s12 + $0x1c] sm:$0xf] %vm211, %v530
  %547 = vst.msk [vmem:[%s12 + $0x20] sm:$0xf] %vm211, %v531
  %548 = vst.msk [vmem:[%s12 + $0x24] sm:$0xf] %vm211, %v532
  %549 = vst.msk [vmem:[%s12 + $0x28] sm:$0xf] %vm211, %v533
  %550 = vst.msk [vmem:[%s12 + $0x2c] sm:$0xf] %vm211, %v534
  %551 = vst.msk [vmem:[%s12 + $0x30] sm:$0xf] %vm211, %v535
  %552 = vst.msk [vmem:[%s12 + $0x34] sm:$0xf] %vm211, %v536
  %553 = vst.msk [vmem:[%s12 + $0x38] sm:$0xf] %vm211, %v537
  %554 = vst.msk [vmem:[%s12 + $0x3c] sm:$0xf] %vm211, %v538
  // Predicated region
  $region38: #{bottle2neck_forward.5} parent=0 // pred_check
    _
  $region39: #{bottle2neck_forward.5} parent=0 // pred_check_branch
    %556 = sbr.rel (0) target = $region41
  $region40: #{bottle2neck_forward.5} parent=0 // pred_region
    _
  $region41: #{bottle2neck_forward.5} parent=0 // pred_fallthru
    _
  // Predicated region
  $region42: #{bottle2neck_forward.5} parent=0 // pred_check
    _
  $region43: #{bottle2neck_forward.5} parent=0 // pred_check_branch
    %558 = sbr.rel (0) target = $region45
  $region44: #{bottle2neck_forward.5} parent=0 // pred_region
    _
  $region45: #{bottle2neck_forward.5} parent=0 // pred_fallthru
    _
  // Predicated region
  $region46: #{bottle2neck_forward.5} parent=0 // pred_check
    _
  $region47: #{bottle2neck_forward.5} parent=0 // pred_check_branch
    %560 = sbr.rel (0) target = $region49
  $region48: #{bottle2neck_forward.5} parent=0 // pred_region
    _
  $region49: #{bottle2neck_forward.5} parent=0 // pred_fallthru
    _
  // Predicated region
  $region50: #{bottle2neck_forward.5} parent=0 // pred_check
    _
  $region51: #{bottle2neck_forward.5} parent=0 // pred_check_branch
    %562 = sbr.rel (0) target = $region53
  $region52: #{bottle2neck_forward.5} parent=0 // pred_region
    _
  $region53: #{bottle2neck_forward.5} parent=0 // pred_fallthru
    _
  // Predicated region
  $region54: #{bottle2neck_forward.5} parent=0 // pred_check
    _
  $region55: #{bottle2neck_forward.5} parent=0 // pred_check_branch
    %564 = sbr.rel (0) target = $region57
  $region56: #{bottle2neck_forward.5} parent=0 // pred_region
    _
  $region57: #{bottle2neck_forward.5} parent=0 // pred_fallthru
    _
  // Predicated region
  $region58: #{bottle2neck_forward.5} parent=0 // pred_check
    _
  $region59: #{bottle2neck_forward.5} parent=0 // pred_check_branch
    %566 = sbr.rel (0) target = $region61
  $region60: #{bottle2neck_forward.5} parent=0 // pred_region
    _
  $region61: #{bottle2neck_forward.5} parent=0 // pred_fallthru
    _
  // Predicated region
  $region62: #{bottle2neck_forward.5} parent=0 // pred_check
    _
  $region63: #{bottle2neck_forward.5} parent=0 // pred_check_branch
    %568 = sbr.rel (0) target = $region65
  $region64: #{bottle2neck_forward.5} parent=0 // pred_region
    _
  $region65: #{bottle2neck_forward.5} parent=0 // pred_fallthru
    _
  // Predicated region
  $region66: #{bottle2neck_forward.5} parent=0 // pred_check
    _
  $region67: #{bottle2neck_forward.5} parent=0 // pred_check_branch
    %570 = sbr.rel (0) target = $region69
  $region68: #{bottle2neck_forward.5} parent=0 // pred_region
    _
  $region69: #{bottle2neck_forward.5} parent=0 // pred_fallthru
    _

// kernel: bottle2neck_forward.8
$region0: #{bottle2neck_forward.8}
  #allocation0 [shape = 'u32[]', space=smem, size = 0x4, offset = 0x4, fixed_abs, tag = 'smem constant byte address 0x4 - core index']
  #allocation1 [shape = 'u32[72,128]{1,0:T(1,128)}', space=vmem, size = 0x9000, scoped, tag = 'internal scratch']
  %s0 = inlined_call_operand.vmem [shape: bf16[128,162], index: 0, kind: input, shape index: {}]
  %s1 = inlined_call_operand.vmem [shape: bf16[162,6], index: 1, kind: input, shape index: {}]
  %s2 = inlined_call_operand.vmem [shape: f32[1,6], index: 2, kind: input, shape index: {}]
  %s3 = inlined_call_operand.vmem [shape: bf16[128,6], index: 3, kind: output, shape index: {}]
  %s4 = sld [smem:[#allocation0]]
  $region22: #{bottle2neck_forward.8} parent=0
    _
  %s6 = ssub.s32 1, %s4
  %s7 = scalar_select 0, %s6, %s4
  // Predicated region
  $region2: #{bottle2neck_forward.8} parent=0 // pred_check
    _
  $region3: #{bottle2neck_forward.8} parent=0 // pred_check_branch
    %9 = sbr.rel (0) target = $region5
  $region4: #{bottle2neck_forward.8} parent=0 // pred_region
    _
  $region5: #{bottle2neck_forward.8} parent=0 // pred_fallthru
    _
  // Predicated region
  $region6: #{bottle2neck_forward.8} parent=0 // pred_check
    _
  $region7: #{bottle2neck_forward.8} parent=0 // pred_check_branch
    %11 = sbr.rel (0) target = $region9
  $region8: #{bottle2neck_forward.8} parent=0 // pred_region
    _
  $region9: #{bottle2neck_forward.8} parent=0 // pred_fallthru
    _
  // Predicated region
  $region10: #{bottle2neck_forward.8} parent=0 // pred_check
    _
  $region11: #{bottle2neck_forward.8} parent=0 // pred_check_branch
    %13 = sbr.rel (0) target = $region13
  $region12: #{bottle2neck_forward.8} parent=0 // pred_region
    _
  $region13: #{bottle2neck_forward.8} parent=0 // pred_fallthru
    _
  %v15 = vld [vmem:[%s0] sm:$0xff]
  %v16 = vld [vmem:[%s0 + $0x8] sm:$0xff]
  %v17 = vld [vmem:[%s0 + $0x10] sm:$0xff]
  %v18 = vld [vmem:[%s0 + $0x18] sm:$0xff]
  %v19 = vld [vmem:[%s0 + $0x20] sm:$0xff]
  %v20 = vld [vmem:[%s0 + $0x28] sm:$0xff]
  %v21 = vld [vmem:[%s0 + $0x30] sm:$0xff]
  %v22 = vld [vmem:[%s0 + $0x38] sm:$0xff]
  %v23 = vld [vmem:[%s0 + $0x40] sm:$0xff]
  %v24 = vld [vmem:[%s0 + $0x48] sm:$0xff]
  %v25 = vld [vmem:[%s0 + $0x50] sm:$0xff]
  %v26 = vld [vmem:[%s0 + $0x58] sm:$0xff]
  %v27 = vld [vmem:[%s0 + $0x60] sm:$0xff]
  %v28 = vld [vmem:[%s0 + $0x68] sm:$0xff]
  %v29 = vld [vmem:[%s0 + $0x70] sm:$0xff]
  %v30 = vld [vmem:[%s0 + $0x78] sm:$0xff]
  %v31 = vld [vmem:[%s1] sm:$0xf]
  %v32 = vld [vmem:[%s1 + $0x4] sm:$0xf]
  %v33 = vld [vmem:[%s1 + $0x8] sm:$0xf]
  %v34 = vld [vmem:[%s1 + $0xc] sm:$0xf]
  %v35 = vld [vmem:[%s1 + $0x10] sm:$0xf]
  %v36 = vld [vmem:[%s1 + $0x14] sm:$0xf]
  %v37 = vld [vmem:[%s1 + $0x18] sm:$0xf]
  %v38 = vld [vmem:[%s1 + $0x1c] sm:$0xf]
  %v39 = vld [vmem:[%s1 + $0x20] sm:$0xf]
  %v40 = vld [vmem:[%s1 + $0x24] sm:$0xf]
  %v41 = vld [vmem:[%s1 + $0x28] sm:$0xf]
  %v42 = vld [vmem:[%s1 + $0x2c] sm:$0xf]
  %v43 = vld [vmem:[%s1 + $0x30] sm:$0xf]
  %v44 = vld [vmem:[%s1 + $0x34] sm:$0xf]
  %v45 = vld [vmem:[%s1 + $0x38] sm:$0xf]
  %v46 = vld [vmem:[%s1 + $0x3c] sm:$0xf]
  %v47 = vld [vmem:[%s1 + $0x40] sm:$0xf]
  %v48 = vld [vmem:[%s1 + $0x44] sm:$0xf]
  %v49 = vld [vmem:[%s1 + $0x48] sm:$0xf]
  %v50 = vld [vmem:[%s1 + $0x4c] sm:$0xf]
  %v51 = vld [vmem:[%s1 + $0x50] sm:$0x1]
  %v52 = vld [vmem:[%s2] sm:$0x1]
  %v54 = vperm.slane %v52, 0
  %v72 = vunpack.c.l.b16 %v15
  %v73 = vunpack.c.h.b16 %v15
  %v74 = vunpack.c.l.b16 %v16
  %v75 = vunpack.c.h.b16 %v16
  %v76 = vunpack.c.l.b16 %v17
  %v77 = vunpack.c.h.b16 %v17
  %v78 = vunpack.c.l.b16 %v18
  %v79 = vunpack.c.h.b16 %v18
  %v80 = vunpack.c.l.b16 %v19
  %v81 = vunpack.c.h.b16 %v19
  %v82 = vunpack.c.l.b16 %v20
  %v83 = vunpack.c.h.b16 %v20
  %v84 = vunpack.c.l.b16 %v21
  %v85 = vunpack.c.h.b16 %v21
  %v86 = vunpack.c.l.b16 %v22
  %v87 = vunpack.c.h.b16 %v22
  %v88 = vunpack.c.l.b16 %v23
  %v89 = vunpack.c.h.b16 %v23
  %v90 = vunpack.c.l.b16 %v24
  %v91 = vunpack.c.h.b16 %v24
  %v92 = vunpack.c.l.b16 %v25
  %v93 = vunpack.c.h.b16 %v25
  %v94 = vunpack.c.l.b16 %v26
  %v95 = vunpack.c.h.b16 %v26
  %v96 = vunpack.c.l.b16 %v27
  %v97 = vunpack.c.h.b16 %v27
  %v98 = vunpack.c.l.b16 %v28
  %v99 = vunpack.c.h.b16 %v28
  %v100 = vunpack.c.l.b16 %v29
  %v101 = vunpack.c.h.b16 %v29
  %v102 = vunpack.c.l.b16 %v30
  %v103 = vunpack.c.h.b16 %v30
  %v104 = vpack.c.b16 %v74, %v72
  %v105 = vpack.c.b16 %v75, %v73
  %v106 = vpack.c.b16 %v78, %v76
  %v107 = vpack.c.b16 %v79, %v77
  %v108 = vpack.c.b16 %v82, %v80
  %v109 = vpack.c.b16 %v83, %v81
  %v110 = vpack.c.b16 %v86, %v84
  %v111 = vpack.c.b16 %v87, %v85
  %v112 = vpack.c.b16 %v90, %v88
  %v113 = vpack.c.b16 %v91, %v89
  %v114 = vpack.c.b16 %v94, %v92
  %v115 = vpack.c.b16 %v95, %v93
  %v116 = vpack.c.b16 %v98, %v96
  %v117 = vpack.c.b16 %v99, %v97
  %v118 = vpack.c.b16 %v102, %v100
  %v119 = vpack.c.b16 %v103, %v101
  %v149 = vunpack.c.l.b16 %v31
  %v150 = vunpack.c.l.b16 %v32
  %v151 = vunpack.c.l.b16 %v33
  %v152 = vunpack.c.l.b16 %v34
  %v153 = vunpack.c.l.b16 %v35
  %v154 = vunpack.c.l.b16 %v36
  %v155 = vunpack.c.l.b16 %v37
  %v156 = vunpack.c.l.b16 %v38
  %v157 = vunpack.c.l.b16 %v39
  %v158 = vunpack.c.l.b16 %v40
  %v159 = vunpack.c.l.b16 %v41
  %v160 = vunpack.c.l.b16 %v42
  %v161 = vunpack.c.l.b16 %v43
  %v162 = vunpack.c.l.b16 %v44
  %v163 = vunpack.c.l.b16 %v45
  %v164 = vunpack.c.l.b16 %v46
  %v165 = vunpack.c.l.b16 %v47
  %v166 = vunpack.c.l.b16 %v48
  %v167 = vunpack.c.l.b16 %v49
  %v168 = vunpack.c.l.b16 %v50
  %v169 = vunpack.c.l.b16 %v51
  %v170 = vpack.c.b16 %v150, %v149
  %v171 = vpack.c.b16 %v152, %v151
  %v172 = vpack.c.b16 %v154, %v153
  %v173 = vpack.c.b16 %v156, %v155
  %v174 = vpack.c.b16 %v158, %v157
  %v175 = vpack.c.b16 %v160, %v159
  %v176 = vpack.c.b16 %v162, %v161
  %v177 = vpack.c.b16 %v164, %v163
  %v178 = vpack.c.b16 %v166, %v165
  %v179 = vpack.c.b16 %v168, %v167
  %v180 = vpack.c.b16 %v169, %v169
  %vm191 = vcmask 277504
  %v193 = vsel %vm191, %v105, 0
  %v196 = vsel %vm191, %v107, 0
  %v199 = vsel %vm191, %v109, 0
  %v202 = vsel %vm191, %v111, 0
  %v205 = vsel %vm191, %v113, 0
  %v208 = vsel %vm191, %v115, 0
  %v211 = vsel %vm191, %v117, 0
  %v214 = vsel %vm191, %v119, 0
  %vm216 = vcmask 1040384
  %v218 = vsel %vm216, %v180, 0
  %220 = vmatpush.bf16.msra.mxu0 %v177
  %221 = vmatpush.bf16.msra.mxu0 %v176
  %222 = vmatpush.bf16.msra.mxu0 %v175
  %223 = vmatpush.bf16.msra.mxu0 %v174
  %224 = vmatpush.bf16.msra.mxu0 %v173
  %225 = vmatpush.bf16.msra.mxu0 %v172
  %226 = vmatpush.bf16.msra.mxu0 %v171
  %227 = vmatpush.bf16.msra.mxu0 %v170
  %228 = vmatmul.bf16.gmra.mxu0 %v104
  %v229 = vpop.f32.mrf.mxu0
  %v230 = vadd.f32 %v54, %v229
  %v231 = vpop.f32.mrf.mxu0
  %v232 = vadd.f32 %v54, %v231
  %233 = vmatmul.bf16.gmra.mxu0 %v106
  %v234 = vpop.f32.mrf.mxu0
  %v235 = vadd.f32 %v54, %v234
  %v236 = vpop.f32.mrf.mxu0
  %v237 = vadd.f32 %v54, %v236
  %238 = vmatmul.bf16.gmra.mxu0 %v108
  %v239 = vpop.f32.mrf.mxu0
  %v240 = vadd.f32 %v54, %v239
  %v241 = vpop.f32.mrf.mxu0
  %v242 = vadd.f32 %v54, %v241
  %243 = vmatmul.bf16.gmra.mxu0 %v110
  %v244 = vpop.f32.mrf.mxu0
  %v245 = vadd.f32 %v54, %v244
  %v246 = vpop.f32.mrf.mxu0
  %v247 = vadd.f32 %v54, %v246
  %248 = vmatmul.bf16.gmra.mxu0 %v112
  %v249 = vpop.f32.mrf.mxu0
  %v250 = vadd.f32 %v54, %v249
  %v251 = vpop.f32.mrf.mxu0
  %v252 = vadd.f32 %v54, %v251
  %253 = vmatmul.bf16.gmra.mxu0 %v114
  %v254 = vpop.f32.mrf.mxu0
  %v255 = vadd.f32 %v54, %v254
  %v256 = vpop.f32.mrf.mxu0
  %v257 = vadd.f32 %v54, %v256
  %258 = vmatmul.bf16.gmra.mxu0 %v116
  %v259 = vpop.f32.mrf.mxu0
  %v260 = vadd.f32 %v54, %v259
  %v261 = vpop.f32.mrf.mxu0
  %v262 = vadd.f32 %v54, %v261
  %263 = vmatmul.bf16.gmra.mxu0 %v118
  %v264 = vpop.f32.mrf.mxu0
  %v265 = vadd.f32 %v54, %v264
  %v266 = vpop.f32.mrf.mxu0
  %v267 = vadd.f32 %v54, %v266
  %268 = vdwg.mxu0
  %269 = vmatpush.bf16.msra.mxu0 0
  %270 = vmatpush.bf16.msra.mxu0 0
  %271 = vmatpush.bf16.msra.mxu0 0
  %272 = vmatpush.bf16.msra.mxu0 0
  %273 = vmatpush.bf16.msra.mxu0 0
  %274 = vmatpush.bf16.msra.mxu0 %v218
  %275 = vmatpush.bf16.msra.mxu0 %v179
  %276 = vmatpush.bf16.msra.mxu0 %v178
  %277 = vmatmul.bf16.gmra.mxu0 %v193
  %v278 = vpop.f32.mrf.mxu0
  %v279 = vadd.f32 %v230, %v278
  %v280 = vpop.f32.mrf.mxu0
  %v281 = vadd.f32 %v232, %v280
  %282 = vmatmul.bf16.gmra.mxu0 %v196
  %v283 = vpop.f32.mrf.mxu0
  %v284 = vadd.f32 %v235, %v283
  %v285 = vpop.f32.mrf.mxu0
  %v286 = vadd.f32 %v237, %v285
  %287 = vmatmul.bf16.gmra.mxu0 %v199
  %v288 = vpop.f32.mrf.mxu0
  %v289 = vadd.f32 %v240, %v288
  %v290 = vpop.f32.mrf.mxu0
  %v291 = vadd.f32 %v242, %v290
  %292 = vmatmul.bf16.gmra.mxu0 %v202
  %v293 = vpop.f32.mrf.mxu0
  %v294 = vadd.f32 %v245, %v293
  %v295 = vpop.f32.mrf.mxu0
  %v296 = vadd.f32 %v247, %v295
  %297 = vmatmul.bf16.gmra.mxu0 %v205
  %v298 = vpop.f32.mrf.mxu0
  %v299 = vadd.f32 %v250, %v298
  %v300 = vpop.f32.mrf.mxu0
  %v301 = vadd.f32 %v252, %v300
  %302 = vmatmul.bf16.gmra.mxu0 %v208
  %v303 = vpop.f32.mrf.mxu0
  %v304 = vadd.f32 %v255, %v303
  %v305 = vpop.f32.mrf.mxu0
  %v306 = vadd.f32 %v257, %v305
  %307 = vmatmul.bf16.gmra.mxu0 %v211
  %v308 = vpop.f32.mrf.mxu0
  %v309 = vadd.f32 %v260, %v308
  %v310 = vpop.f32.mrf.mxu0
  %v311 = vadd.f32 %v262, %v310
  %312 = vmatmul.bf16.gmra.mxu0 %v214
  %v313 = vpop.f32.mrf.mxu0
  %v314 = vadd.f32 %v265, %v313
  %v315 = vpop.f32.mrf.mxu0
  %v316 = vadd.f32 %v267, %v315
  %317 = vdwg.mxu0
  %v318 = vmax.f32 %v279, 0.0
  %v319 = vmax.f32 %v281, 0.0
  %v320 = vmax.f32 %v284, 0.0
  %v321 = vmax.f32 %v286, 0.0
  %v322 = vmax.f32 %v289, 0.0
  %v323 = vmax.f32 %v291, 0.0
  %v324 = vmax.f32 %v294, 0.0
  %v325 = vmax.f32 %v296, 0.0
  %v326 = vmax.f32 %v299, 0.0
  %v327 = vmax.f32 %v301, 0.0
  %v328 = vmax.f32 %v304, 0.0
  %v329 = vmax.f32 %v306, 0.0
  %v330 = vmax.f32 %v309, 0.0
  %v331 = vmax.f32 %v311, 0.0
  %v332 = vmax.f32 %v314, 0.0
  %v333 = vmax.f32 %v316, 0.0
  %v334 = vpack.c.bf16 %v318, %v318
  %v335 = vpack.c.bf16 %v319, %v319
  %v336 = vpack.c.bf16 %v320, %v320
  %v337 = vpack.c.bf16 %v321, %v321
  %v338 = vpack.c.bf16 %v322, %v322
  %v339 = vpack.c.bf16 %v323, %v323
  %v340 = vpack.c.bf16 %v324, %v324
  %v341 = vpack.c.bf16 %v325, %v325
  %v342 = vpack.c.bf16 %v326, %v326
  %v343 = vpack.c.bf16 %v327, %v327
  %v344 = vpack.c.bf16 %v328, %v328
  %v345 = vpack.c.bf16 %v329, %v329
  %v346 = vpack.c.bf16 %v330, %v330
  %v347 = vpack.c.bf16 %v331, %v331
  %v348 = vpack.c.bf16 %v332, %v332
  %v349 = vpack.c.bf16 %v333, %v333
  %vm350 = vcmask 44032
  %351 = vst.msk [vmem:[%s3] sm:$0xf] %vm350, %v334
  %352 = vst.msk [vmem:[%s3 + $0x4] sm:$0xf] %vm350, %v335
  %353 = vst.msk [vmem:[%s3 + $0x8] sm:$0xf] %vm350, %v336
  %354 = vst.msk [vmem:[%s3 + $0xc] sm:$0xf] %vm350, %v337
  %355 = vst.msk [vmem:[%s3 + $0x10] sm:$0xf] %vm350, %v338
  %356 = vst.msk [vmem:[%s3 + $0x14] sm:$0xf] %vm350, %v339
  %357 = vst.msk [vmem:[%s3 + $0x18] sm:$0xf] %vm350, %v340
  %358 = vst.msk [vmem:[%s3 + $0x1c] sm:$0xf] %vm350, %v341
  %359 = vst.msk [vmem:[%s3 + $0x20] sm:$0xf] %vm350, %v342
  %360 = vst.msk [vmem:[%s3 + $0x24] sm:$0xf] %vm350, %v343
  %361 = vst.msk [vmem:[%s3 + $0x28] sm:$0xf] %vm350, %v344
  %362 = vst.msk [vmem:[%s3 + $0x2c] sm:$0xf] %vm350, %v345
  %363 = vst.msk [vmem:[%s3 + $0x30] sm:$0xf] %vm350, %v346
  %364 = vst.msk [vmem:[%s3 + $0x34] sm:$0xf] %vm350, %v347
  %365 = vst.msk [vmem:[%s3 + $0x38] sm:$0xf] %vm350, %v348
  %366 = vst.msk [vmem:[%s3 + $0x3c] sm:$0xf] %vm350, %v349
  // Predicated region
  $region14: #{bottle2neck_forward.8} parent=0 // pred_check
    _
  $region15: #{bottle2neck_forward.8} parent=0 // pred_check_branch
    %368 = sbr.rel (0) target = $region17
  $region16: #{bottle2neck_forward.8} parent=0 // pred_region
    _
  $region17: #{bottle2neck_forward.8} parent=0 // pred_fallthru
    _
  // Predicated region
  $region18: #{bottle2neck_forward.8} parent=0 // pred_check
    _
  $region19: #{bottle2neck_forward.8} parent=0 // pred_check_branch
    %370 = sbr.rel (0) target = $region21
  $region20: #{bottle2neck_forward.8} parent=0 // pred_region
    _
  $region21: #{bottle2neck_forward.8} parent=0 // pred_fallthru
    _

// kernel: bottle2neck_forward.6
$region0: #{bottle2neck_forward.6}
  #allocation0 [shape = 'u32[]', space=smem, size = 0x4, offset = 0x4, fixed_abs, tag = 'smem constant byte address 0x4 - core index']
  #allocation1 [shape = 'u32[72,128]{1,0:T(1,128)}', space=vmem, size = 0x9000, scoped, tag = 'internal scratch']
  %s0 = inlined_call_operand.vmem [shape: bf16[128,162], index: 0, kind: input, shape index: {}]
  %s1 = inlined_call_operand.vmem [shape: bf16[162,6], index: 1, kind: input, shape index: {}]
  %s2 = inlined_call_operand.vmem [shape: f32[1,6], index: 2, kind: input, shape index: {}]
  %s3 = inlined_call_operand.vmem [shape: bf16[128,6], index: 3, kind: input, shape index: {}]
  %s4 = inlined_call_operand.vmem [shape: bf16[128,6], index: 4, kind: output, shape index: {0}]
  %s5 = inlined_call_operand.vmem [shape: bf16[128,6], index: 5, kind: output, shape index: {1}]
  %6 = xla_tuple %s4, %s5
  %s7 = sld [smem:[#allocation0]]
  $region34: #{bottle2neck_forward.6} parent=0
    _
  %s9 = ssub.s32 1, %s7
  %s10 = scalar_select 0, %s9, %s7
  // Predicated region
  $region2: #{bottle2neck_forward.6} parent=0 // pred_check
    _
  $region3: #{bottle2neck_forward.6} parent=0 // pred_check_branch
    %12 = sbr.rel (0) target = $region5
  $region4: #{bottle2neck_forward.6} parent=0 // pred_region
    _
  $region5: #{bottle2neck_forward.6} parent=0 // pred_fallthru
    _
  // Predicated region
  $region6: #{bottle2neck_forward.6} parent=0 // pred_check
    _
  $region7: #{bottle2neck_forward.6} parent=0 // pred_check_branch
    %14 = sbr.rel (0) target = $region9
  $region8: #{bottle2neck_forward.6} parent=0 // pred_region
    _
  $region9: #{bottle2neck_forward.6} parent=0 // pred_fallthru
    _
  // Predicated region
  $region10: #{bottle2neck_forward.6} parent=0 // pred_check
    _
  $region11: #{bottle2neck_forward.6} parent=0 // pred_check_branch
    %16 = sbr.rel (0) target = $region13
  $region12: #{bottle2neck_forward.6} parent=0 // pred_region
    _
  $region13: #{bottle2neck_forward.6} parent=0 // pred_fallthru
    _
  // Predicated region
  $region14: #{bottle2neck_forward.6} parent=0 // pred_check
    _
  $region15: #{bottle2neck_forward.6} parent=0 // pred_check_branch
    %18 = sbr.rel (0) target = $region17
  $region16: #{bottle2neck_forward.6} parent=0 // pred_region
    _
  $region17: #{bottle2neck_forward.6} parent=0 // pred_fallthru
    _
  %v20 = vld [vmem:[%s0] sm:$0xff]
  %v21 = vld [vmem:[%s0 + $0x8] sm:$0xff]
  %v22 = vld [vmem:[%s0 + $0x10] sm:$0xff]
  %v23 = vld [vmem:[%s0 + $0x18] sm:$0xff]
  %v24 = vld [vmem:[%s0 + $0x20] sm:$0xff]
  %v25 = vld [vmem:[%s0 + $0x28] sm:$0xff]
  %v26 = vld [vmem:[%s0 + $0x30] sm:$0xff]
  %v27 = vld [vmem:[%s0 + $0x38] sm:$0xff]
  %v28 = vld [vmem:[%s0 + $0x40] sm:$0xff]
  %v29 = vld [vmem:[%s0 + $0x48] sm:$0xff]
  %v30 = vld [vmem:[%s0 + $0x50] sm:$0xff]
  %v31 = vld [vmem:[%s0 + $0x58] sm:$0xff]
  %v32 = vld [vmem:[%s0 + $0x60] sm:$0xff]
  %v33 = vld [vmem:[%s0 + $0x68] sm:$0xff]
  %v34 = vld [vmem:[%s0 + $0x70] sm:$0xff]
  %v35 = vld [vmem:[%s0 + $0x78] sm:$0xff]
  %v36 = vld [vmem:[%s1] sm:$0xf]
  %v37 = vld [vmem:[%s1 + $0x4] sm:$0xf]
  %v38 = vld [vmem:[%s1 + $0x8] sm:$0xf]
  %v39 = vld [vmem:[%s1 + $0xc] sm:$0xf]
  %v40 = vld [vmem:[%s1 + $0x10] sm:$0xf]
  %v41 = vld [vmem:[%s1 + $0x14] sm:$0xf]
  %v42 = vld [vmem:[%s1 + $0x18] sm:$0xf]
  %v43 = vld [vmem:[%s1 + $0x1c] sm:$0xf]
  %v44 = vld [vmem:[%s1 + $0x20] sm:$0xf]
  %v45 = vld [vmem:[%s1 + $0x24] sm:$0xf]
  %v46 = vld [vmem:[%s1 + $0x28] sm:$0xf]
  %v47 = vld [vmem:[%s1 + $0x2c] sm:$0xf]
  %v48 = vld [vmem:[%s1 + $0x30] sm:$0xf]
  %v49 = vld [vmem:[%s1 + $0x34] sm:$0xf]
  %v50 = vld [vmem:[%s1 + $0x38] sm:$0xf]
  %v51 = vld [vmem:[%s1 + $0x3c] sm:$0xf]
  %v52 = vld [vmem:[%s1 + $0x40] sm:$0xf]
  %v53 = vld [vmem:[%s1 + $0x44] sm:$0xf]
  %v54 = vld [vmem:[%s1 + $0x48] sm:$0xf]
  %v55 = vld [vmem:[%s1 + $0x4c] sm:$0xf]
  %v56 = vld [vmem:[%s1 + $0x50] sm:$0x1]
  %v57 = vld [vmem:[%s2] sm:$0x1]
  %v59 = vperm.slane %v57, 0
  %v77 = vunpack.c.l.b16 %v20
  %v78 = vunpack.c.h.b16 %v20
  %v79 = vunpack.c.l.b16 %v21
  %v80 = vunpack.c.h.b16 %v21
  %v81 = vunpack.c.l.b16 %v22
  %v82 = vunpack.c.h.b16 %v22
  %v83 = vunpack.c.l.b16 %v23
  %v84 = vunpack.c.h.b16 %v23
  %v85 = vunpack.c.l.b16 %v24
  %v86 = vunpack.c.h.b16 %v24
  %v87 = vunpack.c.l.b16 %v25
  %v88 = vunpack.c.h.b16 %v25
  %v89 = vunpack.c.l.b16 %v26
  %v90 = vunpack.c.h.b16 %v26
  %v91 = vunpack.c.l.b16 %v27
  %v92 = vunpack.c.h.b16 %v27
  %v93 = vunpack.c.l.b16 %v28
  %v94 = vunpack.c.h.b16 %v28
  %v95 = vunpack.c.l.b16 %v29
  %v96 = vunpack.c.h.b16 %v29
  %v97 = vunpack.c.l.b16 %v30
  %v98 = vunpack.c.h.b16 %v30
  %v99 = vunpack.c.l.b16 %v31
  %v100 = vunpack.c.h.b16 %v31
  %v101 = vunpack.c.l.b16 %v32
  %v102 = vunpack.c.h.b16 %v32
  %v103 = vunpack.c.l.b16 %v33
  %v104 = vunpack.c.h.b16 %v33
  %v105 = vunpack.c.l.b16 %v34
  %v106 = vunpack.c.h.b16 %v34
  %v107 = vunpack.c.l.b16 %v35
  %v108 = vunpack.c.h.b16 %v35
  %v109 = vpack.c.b16 %v79, %v77
  %v110 = vpack.c.b16 %v80, %v78
  %v111 = vpack.c.b16 %v83, %v81
  %v112 = vpack.c.b16 %v84, %v82
  %v113 = vpack.c.b16 %v87, %v85
  %v114 = vpack.c.b16 %v88, %v86
  %v115 = vpack.c.b16 %v91, %v89
  %v116 = vpack.c.b16 %v92, %v90
  %v117 = vpack.c.b16 %v95, %v93
  %v118 = vpack.c.b16 %v96, %v94
  %v119 = vpack.c.b16 %v99, %v97
  %v120 = vpack.c.b16 %v100, %v98
  %v121 = vpack.c.b16 %v103, %v101
  %v122 = vpack.c.b16 %v104, %v102
  %v123 = vpack.c.b16 %v107, %v105
  %v124 = vpack.c.b16 %v108, %v106
  %v154 = vunpack.c.l.b16 %v36
  %v155 = vunpack.c.l.b16 %v37
  %v156 = vunpack.c.l.b16 %v38
  %v157 = vunpack.c.l.b16 %v39
  %v158 = vunpack.c.l.b16 %v40
  %v159 = vunpack.c.l.b16 %v41
  %v160 = vunpack.c.l.b16 %v42
  %v161 = vunpack.c.l.b16 %v43
  %v162 = vunpack.c.l.b16 %v44
  %v163 = vunpack.c.l.b16 %v45
  %v164 = vunpack.c.l.b16 %v46
  %v165 = vunpack.c.l.b16 %v47
  %v166 = vunpack.c.l.b16 %v48
  %v167 = vunpack.c.l.b16 %v49
  %v168 = vunpack.c.l.b16 %v50
  %v169 = vunpack.c.l.b16 %v51
  %v170 = vunpack.c.l.b16 %v52
  %v171 = vunpack.c.l.b16 %v53
  %v172 = vunpack.c.l.b16 %v54
  %v173 = vunpack.c.l.b16 %v55
  %v174 = vunpack.c.l.b16 %v56
  %v175 = vpack.c.b16 %v155, %v154
  %v176 = vpack.c.b16 %v157, %v156
  %v177 = vpack.c.b16 %v159, %v158
  %v178 = vpack.c.b16 %v161, %v160
  %v179 = vpack.c.b16 %v163, %v162
  %v180 = vpack.c.b16 %v165, %v164
  %v181 = vpack.c.b16 %v167, %v166
  %v182 = vpack.c.b16 %v169, %v168
  %v183 = vpack.c.b16 %v171, %v170
  %v184 = vpack.c.b16 %v173, %v172
  %v185 = vpack.c.b16 %v174, %v174
  %vm196 = vcmask 277504
  %v198 = vsel %vm196, %v110, 0
  %v201 = vsel %vm196, %v112, 0
  %v204 = vsel %vm196, %v114, 0
  %v207 = vsel %vm196, %v116, 0
  %v210 = vsel %vm196, %v118, 0
  %v213 = vsel %vm196, %v120, 0
  %v216 = vsel %vm196, %v122, 0
  %v219 = vsel %vm196, %v124, 0
  %vm221 = vcmask 1040384
  %v223 = vsel %vm221, %v185, 0
  %225 = vmatpush.bf16.msra.mxu0 %v182
  %226 = vmatpush.bf16.msra.mxu0 %v181
  %227 = vmatpush.bf16.msra.mxu0 %v180
  %228 = vmatpush.bf16.msra.mxu0 %v179
  %229 = vmatpush.bf16.msra.mxu0 %v178
  %230 = vmatpush.bf16.msra.mxu0 %v177
  %231 = vmatpush.bf16.msra.mxu0 %v176
  %232 = vmatpush.bf16.msra.mxu0 %v175
  %233 = vmatmul.bf16.gmra.mxu0 %v109
  %v234 = vpop.f32.mrf.mxu0
  %v235 = vadd.f32 %v59, %v234
  %v236 = vpop.f32.mrf.mxu0
  %v237 = vadd.f32 %v59, %v236
  %238 = vmatmul.bf16.gmra.mxu0 %v111
  %v239 = vpop.f32.mrf.mxu0
  %v240 = vadd.f32 %v59, %v239
  %v241 = vpop.f32.mrf.mxu0
  %v242 = vadd.f32 %v59, %v241
  %243 = vmatmul.bf16.gmra.mxu0 %v113
  %v244 = vpop.f32.mrf.mxu0
  %v245 = vadd.f32 %v59, %v244
  %v246 = vpop.f32.mrf.mxu0
  %v247 = vadd.f32 %v59, %v246
  %248 = vmatmul.bf16.gmra.mxu0 %v115
  %v249 = vpop.f32.mrf.mxu0
  %v250 = vadd.f32 %v59, %v249
  %v251 = vpop.f32.mrf.mxu0
  %v252 = vadd.f32 %v59, %v251
  %253 = vmatmul.bf16.gmra.mxu0 %v117
  %v254 = vpop.f32.mrf.mxu0
  %v255 = vadd.f32 %v59, %v254
  %v256 = vpop.f32.mrf.mxu0
  %v257 = vadd.f32 %v59, %v256
  %258 = vmatmul.bf16.gmra.mxu0 %v119
  %v259 = vpop.f32.mrf.mxu0
  %v260 = vadd.f32 %v59, %v259
  %v261 = vpop.f32.mrf.mxu0
  %v262 = vadd.f32 %v59, %v261
  %263 = vmatmul.bf16.gmra.mxu0 %v121
  %v264 = vpop.f32.mrf.mxu0
  %v265 = vadd.f32 %v59, %v264
  %v266 = vpop.f32.mrf.mxu0
  %v267 = vadd.f32 %v59, %v266
  %268 = vmatmul.bf16.gmra.mxu0 %v123
  %v269 = vpop.f32.mrf.mxu0
  %v270 = vadd.f32 %v59, %v269
  %v271 = vpop.f32.mrf.mxu0
  %v272 = vadd.f32 %v59, %v271
  %273 = vdwg.mxu0
  %274 = vmatpush.bf16.msra.mxu0 0
  %275 = vmatpush.bf16.msra.mxu0 0
  %276 = vmatpush.bf16.msra.mxu0 0
  %277 = vmatpush.bf16.msra.mxu0 0
  %278 = vmatpush.bf16.msra.mxu0 0
  %279 = vmatpush.bf16.msra.mxu0 %v223
  %280 = vmatpush.bf16.msra.mxu0 %v184
  %281 = vmatpush.bf16.msra.mxu0 %v183
  %282 = vmatmul.bf16.gmra.mxu0 %v198
  %v283 = vpop.f32.mrf.mxu0
  %v284 = vadd.f32 %v235, %v283
  %v285 = vpop.f32.mrf.mxu0
  %v286 = vadd.f32 %v237, %v285
  %287 = vmatmul.bf16.gmra.mxu0 %v201
  %v288 = vpop.f32.mrf.mxu0
  %v289 = vadd.f32 %v240, %v288
  %v290 = vpop.f32.mrf.mxu0
  %v291 = vadd.f32 %v242, %v290
  %292 = vmatmul.bf16.gmra.mxu0 %v204
  %v293 = vpop.f32.mrf.mxu0
  %v294 = vadd.f32 %v245, %v293
  %v295 = vpop.f32.mrf.mxu0
  %v296 = vadd.f32 %v247, %v295
  %297 = vmatmul.bf16.gmra.mxu0 %v207
  %v298 = vpop.f32.mrf.mxu0
  %v299 = vadd.f32 %v250, %v298
  %v300 = vpop.f32.mrf.mxu0
  %v301 = vadd.f32 %v252, %v300
  %302 = vmatmul.bf16.gmra.mxu0 %v210
  %v303 = vpop.f32.mrf.mxu0
  %v304 = vadd.f32 %v255, %v303
  %v305 = vpop.f32.mrf.mxu0
  %v306 = vadd.f32 %v257, %v305
  %307 = vmatmul.bf16.gmra.mxu0 %v213
  %v308 = vpop.f32.mrf.mxu0
  %v309 = vadd.f32 %v260, %v308
  %v310 = vpop.f32.mrf.mxu0
  %v311 = vadd.f32 %v262, %v310
  %312 = vmatmul.bf16.gmra.mxu0 %v216
  %v313 = vpop.f32.mrf.mxu0
  %v314 = vadd.f32 %v265, %v313
  %v315 = vpop.f32.mrf.mxu0
  %v316 = vadd.f32 %v267, %v315
  %317 = vmatmul.bf16.gmra.mxu0 %v219
  %v318 = vpop.f32.mrf.mxu0
  %v319 = vadd.f32 %v270, %v318
  %v320 = vpop.f32.mrf.mxu0
  %v321 = vadd.f32 %v272, %v320
  %322 = vdwg.mxu0
  %v323 = vmax.f32 %v284, 0.0
  %v324 = vmax.f32 %v286, 0.0
  %v325 = vmax.f32 %v289, 0.0
  %v326 = vmax.f32 %v291, 0.0
  %v327 = vmax.f32 %v294, 0.0
  %v328 = vmax.f32 %v296, 0.0
  %v329 = vmax.f32 %v299, 0.0
  %v330 = vmax.f32 %v301, 0.0
  %v331 = vmax.f32 %v304, 0.0
  %v332 = vmax.f32 %v306, 0.0
  %v333 = vmax.f32 %v309, 0.0
  %v334 = vmax.f32 %v311, 0.0
  %v335 = vmax.f32 %v314, 0.0
  %v336 = vmax.f32 %v316, 0.0
  %v337 = vmax.f32 %v319, 0.0
  %v338 = vmax.f32 %v321, 0.0
  %v339 = vpack.c.bf16 %v323, %v323
  %v340 = vpack.c.bf16 %v324, %v324
  %v341 = vpack.c.bf16 %v325, %v325
  %v342 = vpack.c.bf16 %v326, %v326
  %v343 = vpack.c.bf16 %v327, %v327
  %v344 = vpack.c.bf16 %v328, %v328
  %v345 = vpack.c.bf16 %v329, %v329
  %v346 = vpack.c.bf16 %v330, %v330
  %v347 = vpack.c.bf16 %v331, %v331
  %v348 = vpack.c.bf16 %v332, %v332
  %v349 = vpack.c.bf16 %v333, %v333
  %v350 = vpack.c.bf16 %v334, %v334
  %v351 = vpack.c.bf16 %v335, %v335
  %v352 = vpack.c.bf16 %v336, %v336
  %v353 = vpack.c.bf16 %v337, %v337
  %v354 = vpack.c.bf16 %v338, %v338
  %vm355 = vcmask 44032
  %356 = vst.msk [vmem:[%s4] sm:$0xf] %vm355, %v339
  %357 = vst.msk [vmem:[%s4 + $0x4] sm:$0xf] %vm355, %v340
  %358 = vst.msk [vmem:[%s4 + $0x8] sm:$0xf] %vm355, %v341
  %359 = vst.msk [vmem:[%s4 + $0xc] sm:$0xf] %vm355, %v342
  %360 = vst.msk [vmem:[%s4 + $0x10] sm:$0xf] %vm355, %v343
  %361 = vst.msk [vmem:[%s4 + $0x14] sm:$0xf] %vm355, %v344
  %362 = vst.msk [vmem:[%s4 + $0x18] sm:$0xf] %vm355, %v345
  %363 = vst.msk [vmem:[%s4 + $0x1c] sm:$0xf] %vm355, %v346
  %364 = vst.msk [vmem:[%s4 + $0x20] sm:$0xf] %vm355, %v347
  %365 = vst.msk [vmem:[%s4 + $0x24] sm:$0xf] %vm355, %v348
  %366 = vst.msk [vmem:[%s4 + $0x28] sm:$0xf] %vm355, %v349
  %367 = vst.msk [vmem:[%s4 + $0x2c] sm:$0xf] %vm355, %v350
  %368 = vst.msk [vmem:[%s4 + $0x30] sm:$0xf] %vm355, %v351
  %369 = vst.msk [vmem:[%s4 + $0x34] sm:$0xf] %vm355, %v352
  %370 = vst.msk [vmem:[%s4 + $0x38] sm:$0xf] %vm355, %v353
  %371 = vst.msk [vmem:[%s4 + $0x3c] sm:$0xf] %vm355, %v354
  %v372 = vld [vmem:[%s3] sm:$0xf]
  %v373 = vld [vmem:[%s3 + $0x4] sm:$0xf]
  %v374 = vld [vmem:[%s3 + $0x8] sm:$0xf]
  %v375 = vld [vmem:[%s3 + $0xc] sm:$0xf]
  %v376 = vld [vmem:[%s3 + $0x10] sm:$0xf]
  %v377 = vld [vmem:[%s3 + $0x14] sm:$0xf]
  %v378 = vld [vmem:[%s3 + $0x18] sm:$0xf]
  %v379 = vld [vmem:[%s3 + $0x1c] sm:$0xf]
  %v380 = vld [vmem:[%s3 + $0x20] sm:$0xf]
  %v381 = vld [vmem:[%s3 + $0x24] sm:$0xf]
  %v382 = vld [vmem:[%s3 + $0x28] sm:$0xf]
  %v383 = vld [vmem:[%s3 + $0x2c] sm:$0xf]
  %v384 = vld [vmem:[%s3 + $0x30] sm:$0xf]
  %v385 = vld [vmem:[%s3 + $0x34] sm:$0xf]
  %v386 = vld [vmem:[%s3 + $0x38] sm:$0xf]
  %v387 = vld [vmem:[%s3 + $0x3c] sm:$0xf]
  %v388 = vunpack.c.l.bf16 %v372
  %v389 = vunpack.c.l.bf16 %v373
  %v390 = vunpack.c.l.bf16 %v374
  %v391 = vunpack.c.l.bf16 %v375
  %v392 = vunpack.c.l.bf16 %v376
  %v393 = vunpack.c.l.bf16 %v377
  %v394 = vunpack.c.l.bf16 %v378
  %v395 = vunpack.c.l.bf16 %v379
  %v396 = vunpack.c.l.bf16 %v380
  %v397 = vunpack.c.l.bf16 %v381
  %v398 = vunpack.c.l.bf16 %v382
  %v399 = vunpack.c.l.bf16 %v383
  %v400 = vunpack.c.l.bf16 %v384
  %v401 = vunpack.c.l.bf16 %v385
  %v402 = vunpack.c.l.bf16 %v386
  %v403 = vunpack.c.l.bf16 %v387
  %v404 = vadd.f32 %v323, %v388
  %v405 = vadd.f32 %v324, %v389
  %v406 = vadd.f32 %v325, %v390
  %v407 = vadd.f32 %v326, %v391
  %v408 = vadd.f32 %v327, %v392
  %v409 = vadd.f32 %v328, %v393
  %v410 = vadd.f32 %v329, %v394
  %v411 = vadd.f32 %v330, %v395
  %v412 = vadd.f32 %v331, %v396
  %v413 = vadd.f32 %v332, %v397
  %v414 = vadd.f32 %v333, %v398
  %v415 = vadd.f32 %v334, %v399
  %v416 = vadd.f32 %v335, %v400
  %v417 = vadd.f32 %v336, %v401
  %v418 = vadd.f32 %v337, %v402
  %v419 = vadd.f32 %v338, %v403
  %v420 = vpack.c.bf16 %v404, %v404
  %v421 = vpack.c.bf16 %v405, %v405
  %v422 = vpack.c.bf16 %v406, %v406
  %v423 = vpack.c.bf16 %v407, %v407
  %v424 = vpack.c.bf16 %v408, %v408
  %v425 = vpack.c.bf16 %v409, %v409
  %v426 = vpack.c.bf16 %v410, %v410
  %v427 = vpack.c.bf16 %v411, %v411
  %v428 = vpack.c.bf16 %v412, %v412
  %v429 = vpack.c.bf16 %v413, %v413
  %v430 = vpack.c.bf16 %v414, %v414
  %v431 = vpack.c.bf16 %v415, %v415
  %v432 = vpack.c.bf16 %v416, %v416
  %v433 = vpack.c.bf16 %v417, %v417
  %v434 = vpack.c.bf16 %v418, %v418
  %v435 = vpack.c.bf16 %v419, %v419
  %436 = vst.msk [vmem:[%s5] sm:$0xf] %vm355, %v420
  %437 = vst.msk [vmem:[%s5 + $0x4] sm:$0xf] %vm355, %v421
  %438 = vst.msk [vmem:[%s5 + $0x8] sm:$0xf] %vm355, %v422
  %439 = vst.msk [vmem:[%s5 + $0xc] sm:$0xf] %vm355, %v423
  %440 = vst.msk [vmem:[%s5 + $0x10] sm:$0xf] %vm355, %v424
  %441 = vst.msk [vmem:[%s5 + $0x14] sm:$0xf] %vm355, %v425
  %442 = vst.msk [vmem:[%s5 + $0x18] sm:$0xf] %vm355, %v426
  %443 = vst.msk [vmem:[%s5 + $0x1c] sm:$0xf] %vm355, %v427
  %444 = vst.msk [vmem:[%s5 + $0x20] sm:$0xf] %vm355, %v428
  %445 = vst.msk [vmem:[%s5 + $0x24] sm:$0xf] %vm355, %v429
  %446 = vst.msk [vmem:[%s5 + $0x28] sm:$0xf] %vm355, %v430
  %447 = vst.msk [vmem:[%s5 + $0x2c] sm:$0xf] %vm355, %v431
  %448 = vst.msk [vmem:[%s5 + $0x30] sm:$0xf] %vm355, %v432
  %449 = vst.msk [vmem:[%s5 + $0x34] sm:$0xf] %vm355, %v433
  %450 = vst.msk [vmem:[%s5 + $0x38] sm:$0xf] %vm355, %v434
  %451 = vst.msk [vmem:[%s5 + $0x3c] sm:$0xf] %vm355, %v435
  // Predicated region
  $region18: #{bottle2neck_forward.6} parent=0 // pred_check
    _
  $region19: #{bottle2neck_forward.6} parent=0 // pred_check_branch
    %453 = sbr.rel (0) target = $region21
  $region20: #{bottle2neck_forward.6} parent=0 // pred_region
    _
  $region21: #{bottle2neck_forward.6} parent=0 // pred_fallthru
    _
  // Predicated region
  $region22: #{bottle2neck_forward.6} parent=0 // pred_check
    _
  $region23: #{bottle2neck_forward.6} parent=0 // pred_check_branch
    %455 = sbr.rel (0) target = $region25
  $region24: #{bottle2neck_forward.6} parent=0 // pred_region
    _
  $region25: #{bottle2neck_forward.6} parent=0 // pred_fallthru
    _
  // Predicated region
  $region26: #{bottle2neck_forward.6} parent=0 // pred_check
    _
  $region27: #{bottle2neck_forward.6} parent=0 // pred_check_branch
    %457 = sbr.rel (0) target = $region29
  $region28: #{bottle2neck_forward.6} parent=0 // pred_region
    _
  $region29: #{bottle2neck_forward.6} parent=0 // pred_fallthru
    _
  // Predicated region
  $region30: #{bottle2neck_forward.6} parent=0 // pred_check
    _
  $region31: #{bottle2neck_forward.6} parent=0 // pred_check_branch
    %459 = sbr.rel (0) target = $region33
  $region32: #{bottle2neck_forward.6} parent=0 // pred_region
    _
  $region33: #{bottle2neck_forward.6} parent=0 // pred_fallthru
    _

// kernel: bottle2neck_forward.9
$region0: #{bottle2neck_forward.9}
  #allocation0 [shape = 'u32[]', space=smem, size = 0x4, offset = 0x4, fixed_abs, tag = 'smem constant byte address 0x4 - core index']
  #allocation1 [shape = 'u32[72,128]{1,0:T(1,128)}', space=vmem, size = 0x9000, scoped, tag = 'internal scratch']
  %s0 = inlined_call_operand.vmem [shape: bf16[128,6], index: 0, kind: input, shape index: {}]
  %s1 = inlined_call_operand.vmem [shape: bf16[128,6], index: 1, kind: input, shape index: {}]
  %s2 = inlined_call_operand.vmem [shape: bf16[128,6], index: 2, kind: input, shape index: {}]
  %s3 = inlined_call_operand.vmem [shape: bf16[128,6], index: 3, kind: input, shape index: {}]
  %s4 = inlined_call_operand.vmem [shape: bf16[6,16], index: 4, kind: input, shape index: {}]
  %s5 = inlined_call_operand.vmem [shape: bf16[6,16], index: 5, kind: input, shape index: {}]
  %s6 = inlined_call_operand.vmem [shape: bf16[6,16], index: 6, kind: input, shape index: {}]
  %s7 = inlined_call_operand.vmem [shape: bf16[6,16], index: 7, kind: input, shape index: {}]
  %s8 = inlined_call_operand.vmem [shape: f32[1,16], index: 8, kind: input, shape index: {}]
  %s9 = inlined_call_operand.vmem [shape: f32[128,16], index: 9, kind: input, shape index: {}]
  %s10 = inlined_call_operand.vmem [shape: f32[128,16], index: 10, kind: output, shape index: {}]
  %s11 = sld [smem:[#allocation0]]
  $region50: #{bottle2neck_forward.9} parent=0
    _
  %s13 = ssub.s32 1, %s11
  %s14 = scalar_select 0, %s13, %s11
  // Predicated region
  $region2: #{bottle2neck_forward.9} parent=0 // pred_check
    _
  $region3: #{bottle2neck_forward.9} parent=0 // pred_check_branch
    %16 = sbr.rel (0) target = $region5
  $region4: #{bottle2neck_forward.9} parent=0 // pred_region
    _
  $region5: #{bottle2neck_forward.9} parent=0 // pred_fallthru
    _
  // Predicated region
  $region6: #{bottle2neck_forward.9} parent=0 // pred_check
    _
  $region7: #{bottle2neck_forward.9} parent=0 // pred_check_branch
    %18 = sbr.rel (0) target = $region9
  $region8: #{bottle2neck_forward.9} parent=0 // pred_region
    _
  $region9: #{bottle2neck_forward.9} parent=0 // pred_fallthru
    _
  // Predicated region
  $region10: #{bottle2neck_forward.9} parent=0 // pred_check
    _
  $region11: #{bottle2neck_forward.9} parent=0 // pred_check_branch
    %20 = sbr.rel (0) target = $region13
  $region12: #{bottle2neck_forward.9} parent=0 // pred_region
    _
  $region13: #{bottle2neck_forward.9} parent=0 // pred_fallthru
    _
  // Predicated region
  $region14: #{bottle2neck_forward.9} parent=0 // pred_check
    _
  $region15: #{bottle2neck_forward.9} parent=0 // pred_check_branch
    %22 = sbr.rel (0) target = $region17
  $region16: #{bottle2neck_forward.9} parent=0 // pred_region
    _
  $region17: #{bottle2neck_forward.9} parent=0 // pred_fallthru
    _
  // Predicated region
  $region18: #{bottle2neck_forward.9} parent=0 // pred_check
    _
  $region19: #{bottle2neck_forward.9} parent=0 // pred_check_branch
    %24 = sbr.rel (0) target = $region21
  $region20: #{bottle2neck_forward.9} parent=0 // pred_region
    _
  $region21: #{bottle2neck_forward.9} parent=0 // pred_fallthru
    _
  // Predicated region
  $region22: #{bottle2neck_forward.9} parent=0 // pred_check
    _
  $region23: #{bottle2neck_forward.9} parent=0 // pred_check_branch
    %26 = sbr.rel (0) target = $region25
  $region24: #{bottle2neck_forward.9} parent=0 // pred_region
    _
  $region25: #{bottle2neck_forward.9} parent=0 // pred_fallthru
    _
  // Predicated region
  $region26: #{bottle2neck_forward.9} parent=0 // pred_check
    _
  $region27: #{bottle2neck_forward.9} parent=0 // pred_check_branch
    %28 = sbr.rel (0) target = $region29
  $region28: #{bottle2neck_forward.9} parent=0 // pred_region
    _
  $region29: #{bottle2neck_forward.9} parent=0 // pred_fallthru
    _
  // Predicated region
  $region30: #{bottle2neck_forward.9} parent=0 // pred_check
    _
  $region31: #{bottle2neck_forward.9} parent=0 // pred_check_branch
    %30 = sbr.rel (0) target = $region33
  $region32: #{bottle2neck_forward.9} parent=0 // pred_region
    _
  $region33: #{bottle2neck_forward.9} parent=0 // pred_fallthru
    _
  // Predicated region
  $region34: #{bottle2neck_forward.9} parent=0 // pred_check
    _
  $region35: #{bottle2neck_forward.9} parent=0 // pred_check_branch
    %32 = sbr.rel (0) target = $region37
  $region36: #{bottle2neck_forward.9} parent=0 // pred_region
    _
  $region37: #{bottle2neck_forward.9} parent=0 // pred_fallthru
    _
  // Predicated region
  $region38: #{bottle2neck_forward.9} parent=0 // pred_check
    _
  $region39: #{bottle2neck_forward.9} parent=0 // pred_check_branch
    %34 = sbr.rel (0) target = $region41
  $region40: #{bottle2neck_forward.9} parent=0 // pred_region
    _
  $region41: #{bottle2neck_forward.9} parent=0 // pred_fallthru
    _
  %v36 = vld [vmem:[%s8] sm:$0x1]
  %v37 = vld [vmem:[%s9] sm:$0xff]
  %v38 = vld [vmem:[%s9 + $0x8] sm:$0xff]
  %v39 = vld [vmem:[%s9 + $0x10] sm:$0xff]
  %v40 = vld [vmem:[%s9 + $0x18] sm:$0xff]
  %v41 = vld [vmem:[%s9 + $0x20] sm:$0xff]
  %v42 = vld [vmem:[%s9 + $0x28] sm:$0xff]
  %v43 = vld [vmem:[%s9 + $0x30] sm:$0xff]
  %v44 = vld [vmem:[%s9 + $0x38] sm:$0xff]
  %v45 = vld [vmem:[%s9 + $0x40] sm:$0xff]
  %v46 = vld [vmem:[%s9 + $0x48] sm:$0xff]
  %v47 = vld [vmem:[%s9 + $0x50] sm:$0xff]
  %v48 = vld [vmem:[%s9 + $0x58] sm:$0xff]
  %v49 = vld [vmem:[%s9 + $0x60] sm:$0xff]
  %v50 = vld [vmem:[%s9 + $0x68] sm:$0xff]
  %v51 = vld [vmem:[%s9 + $0x70] sm:$0xff]
  %v52 = vld [vmem:[%s9 + $0x78] sm:$0xff]
  %v54 = vperm.slane %v36, 0
  %v56 = vadd.f32 %v54, %v37
  %v57 = vadd.f32 %v54, %v38
  %v58 = vadd.f32 %v54, %v39
  %v59 = vadd.f32 %v54, %v40
  %v60 = vadd.f32 %v54, %v41
  %v61 = vadd.f32 %v54, %v42
  %v62 = vadd.f32 %v54, %v43
  %v63 = vadd.f32 %v54, %v44
  %v64 = vadd.f32 %v54, %v45
  %v65 = vadd.f32 %v54, %v46
  %v66 = vadd.f32 %v54, %v47
  %v67 = vadd.f32 %v54, %v48
  %v68 = vadd.f32 %v54, %v49
  %v69 = vadd.f32 %v54, %v50
  %v70 = vadd.f32 %v54, %v51
  %v71 = vadd.f32 %v54, %v52
  %v72 = vld [vmem:[%s0] sm:$0xf]
  %v73 = vld [vmem:[%s0 + $0x4] sm:$0xf]
  %v74 = vld [vmem:[%s0 + $0x8] sm:$0xf]
  %v75 = vld [vmem:[%s0 + $0xc] sm:$0xf]
  %v76 = vld [vmem:[%s0 + $0x10] sm:$0xf]
  %v77 = vld [vmem:[%s0 + $0x14] sm:$0xf]
  %v78 = vld [vmem:[%s0 + $0x18] sm:$0xf]
  %v79 = vld [vmem:[%s0 + $0x1c] sm:$0xf]
  %v80 = vld [vmem:[%s0 + $0x20] sm:$0xf]
  %v81 = vld [vmem:[%s0 + $0x24] sm:$0xf]
  %v82 = vld [vmem:[%s0 + $0x28] sm:$0xf]
  %v83 = vld [vmem:[%s0 + $0x2c] sm:$0xf]
  %v84 = vld [vmem:[%s0 + $0x30] sm:$0xf]
  %v85 = vld [vmem:[%s0 + $0x34] sm:$0xf]
  %v86 = vld [vmem:[%s0 + $0x38] sm:$0xf]
  %v87 = vld [vmem:[%s0 + $0x3c] sm:$0xf]
  %v88 = vld [vmem:[%s4] sm:$0x7]
  %v105 = vunpack.c.l.b16 %v72
  %v106 = vunpack.c.l.b16 %v73
  %v107 = vunpack.c.l.b16 %v74
  %v108 = vunpack.c.l.b16 %v75
  %v109 = vunpack.c.l.b16 %v76
  %v110 = vunpack.c.l.b16 %v77
  %v111 = vunpack.c.l.b16 %v78
  %v112 = vunpack.c.l.b16 %v79
  %v113 = vunpack.c.l.b16 %v80
  %v114 = vunpack.c.l.b16 %v81
  %v115 = vunpack.c.l.b16 %v82
  %v116 = vunpack.c.l.b16 %v83
  %v117 = vunpack.c.l.b16 %v84
  %v118 = vunpack.c.l.b16 %v85
  %v119 = vunpack.c.l.b16 %v86
  %v120 = vunpack.c.l.b16 %v87
  %v121 = vpack.c.b16 %v106, %v105
  %v122 = vpack.c.b16 %v108, %v107
  %v123 = vpack.c.b16 %v110, %v109
  %v124 = vpack.c.b16 %v112, %v111
  %v125 = vpack.c.b16 %v114, %v113
  %v126 = vpack.c.b16 %v116, %v115
  %v127 = vpack.c.b16 %v118, %v117
  %v128 = vpack.c.b16 %v120, %v119
  %vm129 = vcmask 48128
  %v131 = vsel %vm129, %v121, 0
  %v134 = vsel %vm129, %v122, 0
  %v137 = vsel %vm129, %v123, 0
  %v140 = vsel %vm129, %v124, 0
  %v143 = vsel %vm129, %v125, 0
  %v146 = vsel %vm129, %v126, 0
  %v149 = vsel %vm129, %v127, 0
  %v152 = vsel %vm129, %v128, 0
  %vm154 = vcmask 1042432
  %v156 = vsel %vm154, %v88, 0
  %158 = vmatpush.bf16.msra.mxu0 0
  %159 = vmatpush.bf16.msra.mxu0 0
  %160 = vmatpush.bf16.msra.mxu0 0
  %161 = vmatpush.bf16.msra.mxu0 0
  %162 = vmatpush.bf16.msra.mxu0 0
  %163 = vmatpush.bf16.msra.mxu0 0
  %164 = vmatpush.bf16.msra.mxu0 0
  %165 = vmatpush.bf16.msra.mxu0 %v156
  %166 = vmatmul.bf16.gmra.mxu0 %v131
  %v167 = vpop.f32.mrf.mxu0
  %v168 = vadd.f32 0.0, %v167
  %v169 = vpop.f32.mrf.mxu0
  %v170 = vadd.f32 0.0, %v169
  %171 = vmatmul.bf16.gmra.mxu0 %v134
  %v172 = vpop.f32.mrf.mxu0
  %v173 = vadd.f32 0.0, %v172
  %v174 = vpop.f32.mrf.mxu0
  %v175 = vadd.f32 0.0, %v174
  %176 = vmatmul.bf16.gmra.mxu0 %v137
  %v177 = vpop.f32.mrf.mxu0
  %v178 = vadd.f32 0.0, %v177
  %v179 = vpop.f32.mrf.mxu0
  %v180 = vadd.f32 0.0, %v179
  %181 = vmatmul.bf16.gmra.mxu0 %v140
  %v182 = vpop.f32.mrf.mxu0
  %v183 = vadd.f32 0.0, %v182
  %v184 = vpop.f32.mrf.mxu0
  %v185 = vadd.f32 0.0, %v184
  %186 = vmatmul.bf16.gmra.mxu0 %v143
  %v187 = vpop.f32.mrf.mxu0
  %v188 = vadd.f32 0.0, %v187
  %v189 = vpop.f32.mrf.mxu0
  %v190 = vadd.f32 0.0, %v189
  %191 = vmatmul.bf16.gmra.mxu0 %v146
  %v192 = vpop.f32.mrf.mxu0
  %v193 = vadd.f32 0.0, %v192
  %v194 = vpop.f32.mrf.mxu0
  %v195 = vadd.f32 0.0, %v194
  %196 = vmatmul.bf16.gmra.mxu0 %v149
  %v197 = vpop.f32.mrf.mxu0
  %v198 = vadd.f32 0.0, %v197
  %v199 = vpop.f32.mrf.mxu0
  %v200 = vadd.f32 0.0, %v199
  %201 = vmatmul.bf16.gmra.mxu0 %v152
  %v202 = vpop.f32.mrf.mxu0
  %v203 = vadd.f32 0.0, %v202
  %v204 = vpop.f32.mrf.mxu0
  %v205 = vadd.f32 0.0, %v204
  %206 = vdwg.mxu0
  %v207 = vadd.f32 %v56, %v168
  %v208 = vadd.f32 %v57, %v170
  %v209 = vadd.f32 %v58, %v173
  %v210 = vadd.f32 %v59, %v175
  %v211 = vadd.f32 %v60, %v178
  %v212 = vadd.f32 %v61, %v180
  %v213 = vadd.f32 %v62, %v183
  %v214 = vadd.f32 %v63, %v185
  %v215 = vadd.f32 %v64, %v188
  %v216 = vadd.f32 %v65, %v190
  %v217 = vadd.f32 %v66, %v193
  %v218 = vadd.f32 %v67, %v195
  %v219 = vadd.f32 %v68, %v198
  %v220 = vadd.f32 %v69, %v200
  %v221 = vadd.f32 %v70, %v203
  %v222 = vadd.f32 %v71, %v205
  %v223 = vld [vmem:[%s1] sm:$0xf]
  %v224 = vld [vmem:[%s1 + $0x4] sm:$0xf]
  %v225 = vld [vmem:[%s1 + $0x8] sm:$0xf]
  %v226 = vld [vmem:[%s1 + $0xc] sm:$0xf]
  %v227 = vld [vmem:[%s1 + $0x10] sm:$0xf]
  %v228 = vld [vmem:[%s1 + $0x14] sm:$0xf]
  %v229 = vld [vmem:[%s1 + $0x18] sm:$0xf]
  %v230 = vld [vmem:[%s1 + $0x1c] sm:$0xf]
  %v231 = vld [vmem:[%s1 + $0x20] sm:$0xf]
  %v232 = vld [vmem:[%s1 + $0x24] sm:$0xf]
  %v233 = vld [vmem:[%s1 + $0x28] sm:$0xf]
  %v234 = vld [vmem:[%s1 + $0x2c] sm:$0xf]
  %v235 = vld [vmem:[%s1 + $0x30] sm:$0xf]
  %v236 = vld [vmem:[%s1 + $0x34] sm:$0xf]
  %v237 = vld [vmem:[%s1 + $0x38] sm:$0xf]
  %v238 = vld [vmem:[%s1 + $0x3c] sm:$0xf]
  %v239 = vld [vmem:[%s5] sm:$0x7]
  %v256 = vunpack.c.l.b16 %v223
  %v257 = vunpack.c.l.b16 %v224
  %v258 = vunpack.c.l.b16 %v225
  %v259 = vunpack.c.l.b16 %v226
  %v260 = vunpack.c.l.b16 %v227
  %v261 = vunpack.c.l.b16 %v228
  %v262 = vunpack.c.l.b16 %v229
  %v263 = vunpack.c.l.b16 %v230
  %v264 = vunpack.c.l.b16 %v231
  %v265 = vunpack.c.l.b16 %v232
  %v266 = vunpack.c.l.b16 %v233
  %v267 = vunpack.c.l.b16 %v234
  %v268 = vunpack.c.l.b16 %v235
  %v269 = vunpack.c.l.b16 %v236
  %v270 = vunpack.c.l.b16 %v237
  %v271 = vunpack.c.l.b16 %v238
  %v272 = vpack.c.b16 %v257, %v256
  %v273 = vpack.c.b16 %v259, %v258
  %v274 = vpack.c.b16 %v261, %v260
  %v275 = vpack.c.b16 %v263, %v262
  %v276 = vpack.c.b16 %v265, %v264
  %v277 = vpack.c.b16 %v267, %v266
  %v278 = vpack.c.b16 %v269, %v268
  %v279 = vpack.c.b16 %v271, %v270
  %v281 = vsel %vm129, %v272, 0
  %v284 = vsel %vm129, %v273, 0
  %v287 = vsel %vm129, %v274, 0
  %v290 = vsel %vm129, %v275, 0
  %v293 = vsel %vm129, %v276, 0
  %v296 = vsel %vm129, %v277, 0
  %v299 = vsel %vm129, %v278, 0
  %v302 = vsel %vm129, %v279, 0
  %v305 = vsel %vm154, %v239, 0
  %307 = vmatpush.bf16.msra.mxu0 0
  %308 = vmatpush.bf16.msra.mxu0 0
  %309 = vmatpush.bf16.msra.mxu0 0
  %310 = vmatpush.bf16.msra.mxu0 0
  %311 = vmatpush.bf16.msra.mxu0 0
  %312 = vmatpush.bf16.msra.mxu0 0
  %313 = vmatpush.bf16.msra.mxu0 0
  %314 = vmatpush.bf16.msra.mxu0 %v305
  %315 = vmatmul.bf16.gmra.mxu0 %v281
  %v316 = vpop.f32.mrf.mxu0
  %v317 = vadd.f32 0.0, %v316
  %v318 = vpop.f32.mrf.mxu0
  %v319 = vadd.f32 0.0, %v318
  %320 = vmatmul.bf16.gmra.mxu0 %v284
  %v321 = vpop.f32.mrf.mxu0
  %v322 = vadd.f32 0.0, %v321
  %v323 = vpop.f32.mrf.mxu0
  %v324 = vadd.f32 0.0, %v323
  %325 = vmatmul.bf16.gmra.mxu0 %v287
  %v326 = vpop.f32.mrf.mxu0
  %v327 = vadd.f32 0.0, %v326
  %v328 = vpop.f32.mrf.mxu0
  %v329 = vadd.f32 0.0, %v328
  %330 = vmatmul.bf16.gmra.mxu0 %v290
  %v331 = vpop.f32.mrf.mxu0
  %v332 = vadd.f32 0.0, %v331
  %v333 = vpop.f32.mrf.mxu0
  %v334 = vadd.f32 0.0, %v333
  %335 = vmatmul.bf16.gmra.mxu0 %v293
  %v336 = vpop.f32.mrf.mxu0
  %v337 = vadd.f32 0.0, %v336
  %v338 = vpop.f32.mrf.mxu0
  %v339 = vadd.f32 0.0, %v338
  %340 = vmatmul.bf16.gmra.mxu0 %v296
  %v341 = vpop.f32.mrf.mxu0
  %v342 = vadd.f32 0.0, %v341
  %v343 = vpop.f32.mrf.mxu0
  %v344 = vadd.f32 0.0, %v343
  %345 = vmatmul.bf16.gmra.mxu0 %v299
  %v346 = vpop.f32.mrf.mxu0
  %v347 = vadd.f32 0.0, %v346
  %v348 = vpop.f32.mrf.mxu0
  %v349 = vadd.f32 0.0, %v348
  %350 = vmatmul.bf16.gmra.mxu0 %v302
  %v351 = vpop.f32.mrf.mxu0
  %v352 = vadd.f32 0.0, %v351
  %v353 = vpop.f32.mrf.mxu0
  %v354 = vadd.f32 0.0, %v353
  %355 = vdwg.mxu0
  %v356 = vadd.f32 %v207, %v317
  %v357 = vadd.f32 %v208, %v319
  %v358 = vadd.f32 %v209, %v322
  %v359 = vadd.f32 %v210, %v324
  %v360 = vadd.f32 %v211, %v327
  %v361 = vadd.f32 %v212, %v329
  %v362 = vadd.f32 %v213, %v332
  %v363 = vadd.f32 %v214, %v334
  %v364 = vadd.f32 %v215, %v337
  %v365 = vadd.f32 %v216, %v339
  %v366 = vadd.f32 %v217, %v342
  %v367 = vadd.f32 %v218, %v344
  %v368 = vadd.f32 %v219, %v347
  %v369 = vadd.f32 %v220, %v349
  %v370 = vadd.f32 %v221, %v352
  %v371 = vadd.f32 %v222, %v354
  %v372 = vld [vmem:[%s2] sm:$0xf]
  %v373 = vld [vmem:[%s2 + $0x4] sm:$0xf]
  %v374 = vld [vmem:[%s2 + $0x8] sm:$0xf]
  %v375 = vld [vmem:[%s2 + $0xc] sm:$0xf]
  %v376 = vld [vmem:[%s2 + $0x10] sm:$0xf]
  %v377 = vld [vmem:[%s2 + $0x14] sm:$0xf]
  %v378 = vld [vmem:[%s2 + $0x18] sm:$0xf]
  %v379 = vld [vmem:[%s2 + $0x1c] sm:$0xf]
  %v380 = vld [vmem:[%s2 + $0x20] sm:$0xf]
  %v381 = vld [vmem:[%s2 + $0x24] sm:$0xf]
  %v382 = vld [vmem:[%s2 + $0x28] sm:$0xf]
  %v383 = vld [vmem:[%s2 + $0x2c] sm:$0xf]
  %v384 = vld [vmem:[%s2 + $0x30] sm:$0xf]
  %v385 = vld [vmem:[%s2 + $0x34] sm:$0xf]
  %v386 = vld [vmem:[%s2 + $0x38] sm:$0xf]
  %v387 = vld [vmem:[%s2 + $0x3c] sm:$0xf]
  %v388 = vld [vmem:[%s6] sm:$0x7]
  %v405 = vunpack.c.l.b16 %v372
  %v406 = vunpack.c.l.b16 %v373
  %v407 = vunpack.c.l.b16 %v374
  %v408 = vunpack.c.l.b16 %v375
  %v409 = vunpack.c.l.b16 %v376
  %v410 = vunpack.c.l.b16 %v377
  %v411 = vunpack.c.l.b16 %v378
  %v412 = vunpack.c.l.b16 %v379
  %v413 = vunpack.c.l.b16 %v380
  %v414 = vunpack.c.l.b16 %v381
  %v415 = vunpack.c.l.b16 %v382
  %v416 = vunpack.c.l.b16 %v383
  %v417 = vunpack.c.l.b16 %v384
  %v418 = vunpack.c.l.b16 %v385
  %v419 = vunpack.c.l.b16 %v386
  %v420 = vunpack.c.l.b16 %v387
  %v421 = vpack.c.b16 %v406, %v405
  %v422 = vpack.c.b16 %v408, %v407
  %v423 = vpack.c.b16 %v410, %v409
  %v424 = vpack.c.b16 %v412, %v411
  %v425 = vpack.c.b16 %v414, %v413
  %v426 = vpack.c.b16 %v416, %v415
  %v427 = vpack.c.b16 %v418, %v417
  %v428 = vpack.c.b16 %v420, %v419
  %v430 = vsel %vm129, %v421, 0
  %v433 = vsel %vm129, %v422, 0
  %v436 = vsel %vm129, %v423, 0
  %v439 = vsel %vm129, %v424, 0
  %v442 = vsel %vm129, %v425, 0
  %v445 = vsel %vm129, %v426, 0
  %v448 = vsel %vm129, %v427, 0
  %v451 = vsel %vm129, %v428, 0
  %v454 = vsel %vm154, %v388, 0
  %456 = vmatpush.bf16.msra.mxu0 0
  %457 = vmatpush.bf16.msra.mxu0 0
  %458 = vmatpush.bf16.msra.mxu0 0
  %459 = vmatpush.bf16.msra.mxu0 0
  %460 = vmatpush.bf16.msra.mxu0 0
  %461 = vmatpush.bf16.msra.mxu0 0
  %462 = vmatpush.bf16.msra.mxu0 0
  %463 = vmatpush.bf16.msra.mxu0 %v454
  %464 = vmatmul.bf16.gmra.mxu0 %v430
  %v465 = vpop.f32.mrf.mxu0
  %v466 = vadd.f32 0.0, %v465
  %v467 = vpop.f32.mrf.mxu0
  %v468 = vadd.f32 0.0, %v467
  %469 = vmatmul.bf16.gmra.mxu0 %v433
  %v470 = vpop.f32.mrf.mxu0
  %v471 = vadd.f32 0.0, %v470
  %v472 = vpop.f32.mrf.mxu0
  %v473 = vadd.f32 0.0, %v472
  %474 = vmatmul.bf16.gmra.mxu0 %v436
  %v475 = vpop.f32.mrf.mxu0
  %v476 = vadd.f32 0.0, %v475
  %v477 = vpop.f32.mrf.mxu0
  %v478 = vadd.f32 0.0, %v477
  %479 = vmatmul.bf16.gmra.mxu0 %v439
  %v480 = vpop.f32.mrf.mxu0
  %v481 = vadd.f32 0.0, %v480
  %v482 = vpop.f32.mrf.mxu0
  %v483 = vadd.f32 0.0, %v482
  %484 = vmatmul.bf16.gmra.mxu0 %v442
  %v485 = vpop.f32.mrf.mxu0
  %v486 = vadd.f32 0.0, %v485
  %v487 = vpop.f32.mrf.mxu0
  %v488 = vadd.f32 0.0, %v487
  %489 = vmatmul.bf16.gmra.mxu0 %v445
  %v490 = vpop.f32.mrf.mxu0
  %v491 = vadd.f32 0.0, %v490
  %v492 = vpop.f32.mrf.mxu0
  %v493 = vadd.f32 0.0, %v492
  %494 = vmatmul.bf16.gmra.mxu0 %v448
  %v495 = vpop.f32.mrf.mxu0
  %v496 = vadd.f32 0.0, %v495
  %v497 = vpop.f32.mrf.mxu0
  %v498 = vadd.f32 0.0, %v497
  %499 = vmatmul.bf16.gmra.mxu0 %v451
  %v500 = vpop.f32.mrf.mxu0
  %v501 = vadd.f32 0.0, %v500
  %v502 = vpop.f32.mrf.mxu0
  %v503 = vadd.f32 0.0, %v502
  %504 = vdwg.mxu0
  %v505 = vadd.f32 %v356, %v466
  %v506 = vadd.f32 %v357, %v468
  %v507 = vadd.f32 %v358, %v471
  %v508 = vadd.f32 %v359, %v473
  %v509 = vadd.f32 %v360, %v476
  %v510 = vadd.f32 %v361, %v478
  %v511 = vadd.f32 %v362, %v481
  %v512 = vadd.f32 %v363, %v483
  %v513 = vadd.f32 %v364, %v486
  %v514 = vadd.f32 %v365, %v488
  %v515 = vadd.f32 %v366, %v491
  %v516 = vadd.f32 %v367, %v493
  %v517 = vadd.f32 %v368, %v496
  %v518 = vadd.f32 %v369, %v498
  %v519 = vadd.f32 %v370, %v501
  %v520 = vadd.f32 %v371, %v503
  %v521 = vld [vmem:[%s3] sm:$0xf]
  %v522 = vld [vmem:[%s3 + $0x4] sm:$0xf]
  %v523 = vld [vmem:[%s3 + $0x8] sm:$0xf]
  %v524 = vld [vmem:[%s3 + $0xc] sm:$0xf]
  %v525 = vld [vmem:[%s3 + $0x10] sm:$0xf]
  %v526 = vld [vmem:[%s3 + $0x14] sm:$0xf]
  %v527 = vld [vmem:[%s3 + $0x18] sm:$0xf]
  %v528 = vld [vmem:[%s3 + $0x1c] sm:$0xf]
  %v529 = vld [vmem:[%s3 + $0x20] sm:$0xf]
  %v530 = vld [vmem:[%s3 + $0x24] sm:$0xf]
  %v531 = vld [vmem:[%s3 + $0x28] sm:$0xf]
  %v532 = vld [vmem:[%s3 + $0x2c] sm:$0xf]
  %v533 = vld [vmem:[%s3 + $0x30] sm:$0xf]
  %v534 = vld [vmem:[%s3 + $0x34] sm:$0xf]
  %v535 = vld [vmem:[%s3 + $0x38] sm:$0xf]
  %v536 = vld [vmem:[%s3 + $0x3c] sm:$0xf]
  %v537 = vld [vmem:[%s7] sm:$0x7]
  %v554 = vunpack.c.l.b16 %v521
  %v555 = vunpack.c.l.b16 %v522
  %v556 = vunpack.c.l.b16 %v523
  %v557 = vunpack.c.l.b16 %v524
  %v558 = vunpack.c.l.b16 %v525
  %v559 = vunpack.c.l.b16 %v526
  %v560 = vunpack.c.l.b16 %v527
  %v561 = vunpack.c.l.b16 %v528
  %v562 = vunpack.c.l.b16 %v529
  %v563 = vunpack.c.l.b16 %v530
  %v564 = vunpack.c.l.b16 %v531
  %v565 = vunpack.c.l.b16 %v532
  %v566 = vunpack.c.l.b16 %v533
  %v567 = vunpack.c.l.b16 %v534
  %v568 = vunpack.c.l.b16 %v535
  %v569 = vunpack.c.l.b16 %v536
  %v570 = vpack.c.b16 %v555, %v554
  %v571 = vpack.c.b16 %v557, %v556
  %v572 = vpack.c.b16 %v559, %v558
  %v573 = vpack.c.b16 %v561, %v560
  %v574 = vpack.c.b16 %v563, %v562
  %v575 = vpack.c.b16 %v565, %v564
  %v576 = vpack.c.b16 %v567, %v566
  %v577 = vpack.c.b16 %v569, %v568
  %v579 = vsel %vm129, %v570, 0
  %v582 = vsel %vm129, %v571, 0
  %v585 = vsel %vm129, %v572, 0
  %v588 = vsel %vm129, %v573, 0
  %v591 = vsel %vm129, %v574, 0
  %v594 = vsel %vm129, %v575, 0
  %v597 = vsel %vm129, %v576, 0
  %v600 = vsel %vm129, %v577, 0
  %v603 = vsel %vm154, %v537, 0
  %605 = vmatpush.bf16.msra.mxu0 0
  %606 = vmatpush.bf16.msra.mxu0 0
  %607 = vmatpush.bf16.msra.mxu0 0
  %608 = vmatpush.bf16.msra.mxu0 0
  %609 = vmatpush.bf16.msra.mxu0 0
  %610 = vmatpush.bf16.msra.mxu0 0
  %611 = vmatpush.bf16.msra.mxu0 0
  %612 = vmatpush.bf16.msra.mxu0 %v603
  %613 = vmatmul.bf16.gmra.mxu0 %v579
  %v614 = vpop.f32.mrf.mxu0
  %v615 = vadd.f32 0.0, %v614
  %v616 = vpop.f32.mrf.mxu0
  %v617 = vadd.f32 0.0, %v616
  %618 = vmatmul.bf16.gmra.mxu0 %v582
  %v619 = vpop.f32.mrf.mxu0
  %v620 = vadd.f32 0.0, %v619
  %v621 = vpop.f32.mrf.mxu0
  %v622 = vadd.f32 0.0, %v621
  %623 = vmatmul.bf16.gmra.mxu0 %v585
  %v624 = vpop.f32.mrf.mxu0
  %v625 = vadd.f32 0.0, %v624
  %v626 = vpop.f32.mrf.mxu0
  %v627 = vadd.f32 0.0, %v626
  %628 = vmatmul.bf16.gmra.mxu0 %v588
  %v629 = vpop.f32.mrf.mxu0
  %v630 = vadd.f32 0.0, %v629
  %v631 = vpop.f32.mrf.mxu0
  %v632 = vadd.f32 0.0, %v631
  %633 = vmatmul.bf16.gmra.mxu0 %v591
  %v634 = vpop.f32.mrf.mxu0
  %v635 = vadd.f32 0.0, %v634
  %v636 = vpop.f32.mrf.mxu0
  %v637 = vadd.f32 0.0, %v636
  %638 = vmatmul.bf16.gmra.mxu0 %v594
  %v639 = vpop.f32.mrf.mxu0
  %v640 = vadd.f32 0.0, %v639
  %v641 = vpop.f32.mrf.mxu0
  %v642 = vadd.f32 0.0, %v641
  %643 = vmatmul.bf16.gmra.mxu0 %v597
  %v644 = vpop.f32.mrf.mxu0
  %v645 = vadd.f32 0.0, %v644
  %v646 = vpop.f32.mrf.mxu0
  %v647 = vadd.f32 0.0, %v646
  %648 = vmatmul.bf16.gmra.mxu0 %v600
  %v649 = vpop.f32.mrf.mxu0
  %v650 = vadd.f32 0.0, %v649
  %v651 = vpop.f32.mrf.mxu0
  %v652 = vadd.f32 0.0, %v651
  %653 = vdwg.mxu0
  %v654 = vadd.f32 %v505, %v615
  %v655 = vadd.f32 %v506, %v617
  %v656 = vadd.f32 %v507, %v620
  %v657 = vadd.f32 %v508, %v622
  %v658 = vadd.f32 %v509, %v625
  %v659 = vadd.f32 %v510, %v627
  %v660 = vadd.f32 %v511, %v630
  %v661 = vadd.f32 %v512, %v632
  %v662 = vadd.f32 %v513, %v635
  %v663 = vadd.f32 %v514, %v637
  %v664 = vadd.f32 %v515, %v640
  %v665 = vadd.f32 %v516, %v642
  %v666 = vadd.f32 %v517, %v645
  %v667 = vadd.f32 %v518, %v647
  %v668 = vadd.f32 %v519, %v650
  %v669 = vadd.f32 %v520, %v652
  %v670 = vmax.f32 %v654, 0.0
  %v671 = vmax.f32 %v655, 0.0
  %v672 = vmax.f32 %v656, 0.0
  %v673 = vmax.f32 %v657, 0.0
  %v674 = vmax.f32 %v658, 0.0
  %v675 = vmax.f32 %v659, 0.0
  %v676 = vmax.f32 %v660, 0.0
  %v677 = vmax.f32 %v661, 0.0
  %v678 = vmax.f32 %v662, 0.0
  %v679 = vmax.f32 %v663, 0.0
  %v680 = vmax.f32 %v664, 0.0
  %v681 = vmax.f32 %v665, 0.0
  %v682 = vmax.f32 %v666, 0.0
  %v683 = vmax.f32 %v667, 0.0
  %v684 = vmax.f32 %v668, 0.0
  %v685 = vmax.f32 %v669, 0.0
  %vm686 = vcmask 130048
  %687 = vst.msk [vmem:[%s10] sm:$0xff] %vm686, %v670
  %688 = vst.msk [vmem:[%s10 + $0x8] sm:$0xff] %vm686, %v671
  %689 = vst.msk [vmem:[%s10 + $0x10] sm:$0xff] %vm686, %v672
  %690 = vst.msk [vmem:[%s10 + $0x18] sm:$0xff] %vm686, %v673
  %691 = vst.msk [vmem:[%s10 + $0x20] sm:$0xff] %vm686, %v674
  %692 = vst.msk [vmem:[%s10 + $0x28] sm:$0xff] %vm686, %v675
  %693 = vst.msk [vmem:[%s10 + $0x30] sm:$0xff] %vm686, %v676
  %694 = vst.msk [vmem:[%s10 + $0x38] sm:$0xff] %vm686, %v677
  %695 = vst.msk [vmem:[%s10 + $0x40] sm:$0xff] %vm686, %v678
  %696 = vst.msk [vmem:[%s10 + $0x48] sm:$0xff] %vm686, %v679
  %697 = vst.msk [vmem:[%s10 + $0x50] sm:$0xff] %vm686, %v680
  %698 = vst.msk [vmem:[%s10 + $0x58] sm:$0xff] %vm686, %v681
  %699 = vst.msk [vmem:[%s10 + $0x60] sm:$0xff] %vm686, %v682
  %700 = vst.msk [vmem:[%s10 + $0x68] sm:$0xff] %vm686, %v683
  %701 = vst.msk [vmem:[%s10 + $0x70] sm:$0xff] %vm686, %v684
  %702 = vst.msk [vmem:[%s10 + $0x78] sm:$0xff] %vm686, %v685
  // Predicated region
  $region42: #{bottle2neck_forward.9} parent=0 // pred_check
    _
  $region43: #{bottle2neck_forward.9} parent=0 // pred_check_branch
    %704 = sbr.rel (0) target = $region45
  $region44: #{bottle2neck_forward.9} parent=0 // pred_region
    _
  $region45: #{bottle2neck_forward.9} parent=0 // pred_fallthru
    _
  // Predicated region
  $region46: #{bottle2neck_forward.9} parent=0 // pred_check
    _
  $region47: #{bottle2neck_forward.9} parent=0 // pred_check_branch
    %706 = sbr.rel (0) target = $region49
  $region48: #{bottle2neck_forward.9} parent=0 // pred_region
    _
  $region49: #{bottle2neck_forward.9} parent=0 // pred_fallthru
    _

</llo_original>
